<compile_context>
chip_gen: v7x
topology: tpu7x:2x2x1
jax: 0.10.0
libtpu: 0.0.40
codegen_flags: <defaults>
</compile_context>

<pallas_src>
import jax
import jax.numpy as jnp
from jax.experimental import pallas as pl
from jax.experimental.pallas import tpu as pltpu


def _moe_ffn_kernel(flags_ref, gate_ref, x_ref, w1_ref, b1_ref, w2_ref, b2_ref,
                    o_ref, acc_ref):
    i = pl.program_id(0)          # token tile
    e = pl.program_id(1)          # expert (reduction)
    f = pl.program_id(2)          # F tile (reduction)

    @pl.when(jnp.logical_and(e == 0, f == 0))
    def _():
        acc_ref[...] = jnp.zeros_like(acc_ref)

    # Skip the whole expert FFN when no token in this tile routed to expert e
    # (the gated contribution is exactly zero).
    @pl.when(flags_ref[e, i] != 0)
    def _():
        x = x_ref[...]                                        # (tm, H) bf16
        gate = gate_ref[...].astype(jnp.float32)              # (tm, 1) f32

        # Linear(H -> tf) on this F tile, f32 MXU accumulation.
        h = jnp.dot(x, w1_ref[...], preferred_element_type=jnp.float32)
        h = h + b1_ref[...].astype(jnp.float32)               # (tm, tf)
        # tanh GELU lowers to the EUP (its own VLIW slot).
        # TODO(synk): set approximate=False if the reference config uses exact erf GELU.
        h = jax.nn.gelu(h, approximate=True)

        # Partial Linear(tf -> H); accumulate gated contribution.
        y = jnp.dot(h.astype(x.dtype), w2_ref[...],
                    preferred_element_type=jnp.float32)       # (tm, H)
        acc_ref[...] += gate * y

        # Second-layer bias is added once per expert (on the first F tile).
        @pl.when(f == 0)
        def _():
            acc_ref[...] += gate * b2_ref[...].astype(jnp.float32)

    @pl.when(jnp.logical_and(e == pl.num_programs(1) - 1,
                             f == pl.num_programs(2) - 1))
    def _():
        o_ref[...] = acc_ref[...].astype(o_ref.dtype)


def _round_up(v, m):
    return (v + m - 1) // m * m


def _vmem_bytes(tm, tf, h, dtype_bytes=2):
    """Rough VMEM estimate: double-buffered inputs/outputs + f32 accumulator."""
    x = 2 * tm * h * dtype_bytes
    out = 2 * tm * h * dtype_bytes
    gate = 2 * _round_up(tm, 8) * 128 * 4
    w1 = 2 * h * tf * dtype_bytes
    w2 = 2 * tf * h * dtype_bytes
    b1 = 2 * 8 * _round_up(tf, 128) * dtype_bytes
    b2 = 2 * 8 * _round_up(h, 128) * dtype_bytes
    acc = tm * h * 4
    return x + out + gate + w1 + w2 + b1 + b2 + acc


_VMEM_BUDGET = 40 * 1024 * 1024   # conservative: leaves headroom on v7x (64 MiB)


def experts_ffn(x, selected_probs, selected_experts, w1, b1, w2, b2,
                *, tm=None, tf=None):
    """x: (B, S, H) bf16
       selected_probs:   (K, B, S, 1)
       selected_experts: (K, B, S, 1) int
       w1: (E, H, F), b1: (E, F), w2: (E, F, H), b2: (E, H)
       returns (B, S, H) in x.dtype
    """
    B, S, H = x.shape
    E, _, F = w1.shape
    K = selected_probs.shape[0]
    T = B * S

    # ---- tile selection ------------------------------------------------------
    if tm is None:
        tm = min(1024, _round_up(T, 8))
        if tm > 256:
            tm = _round_up(tm, 256)          # fill the 256x256 MXU (v6e/v7x)
    assert tm % 8 == 0

    if tf is None:
        if F % 128 == 0:
            cands = [d for d in range(128, F + 1, 128) if F % d == 0]
            tf = cands[-1]
            while len(cands) > 1 and _vmem_bytes(tm, tf, H) > _VMEM_BUDGET:
                cands.pop()
                tf = cands[-1]
        else:
            tf = F                            # no clean 128-granular split
    assert F % tf == 0 and (tf % 128 == 0 or tf == F)

    while tm > 256 and _vmem_bytes(tm, tf, H) > _VMEM_BUDGET:
        tm = max(256, _round_up(tm // 2, 256))

    T_pad = _round_up(T, tm)
    n_i = T_pad // tm
    n_f = F // tf

    # ---- host-side prep ------------------------------------------------------
    x2 = x.reshape(T, H)
    if T_pad != T:
        x2 = jnp.pad(x2, ((0, T_pad - T), (0, 0)))

    # Dense routing gate: gates[e, t] = sum_j probs[j, t] * (sel[j, t] == e).
    probs2 = selected_probs.reshape(K, T).astype(jnp.float32)          # (K, T)
    sel2 = selected_experts.reshape(K, T).astype(jnp.int32)            # (K, T)
    onehot = (sel2[:, :, None] ==
              jnp.arange(E, dtype=jnp.int32)[None, None, :]).astype(jnp.float32)
    gates = jnp.einsum('kt,kte->et', probs2, onehot)                   # (E, T)
    if T_pad != T:
        gates = jnp.pad(gates, ((0, 0), (0, T_pad - T)))               # (E, T_pad)

    # Per-(expert, token tile) activity flag for the pl.when skip.
    flags = (jnp.max(jnp.abs(gates).reshape(E, n_i, tm), axis=-1) > 0.0
             ).astype(jnp.int32)                                       # (E, n_i)

    gates3 = gates.reshape(E, T_pad, 1)
    b1r = b1.reshape(E, 1, F)
    b2r = b2.reshape(E, 1, H)

    vmem_limit = int(min(64 * 1024 * 1024,
                         max(32 * 1024 * 1024,
                             1.5 * _vmem_bytes(tm, tf, H))))

    grid = (n_i, E, n_f)

    out = pl.pallas_call(
        _moe_ffn_kernel,
        out_shape=jax.ShapeDtypeStruct((T_pad, H), x.dtype),
        grid_spec=pltpu.PrefetchScalarGridSpec(
            num_scalar_prefetch=1,
            grid=grid,
            in_specs=[
                pl.BlockSpec((None, tm, 1), lambda i, e, f, flags: (e, i, 0)),   # gate
                pl.BlockSpec((tm, H), lambda i, e, f, flags: (i, 0)),            # x
                pl.BlockSpec((None, H, tf), lambda i, e, f, flags: (e, 0, f)),   # w1[e]
                pl.BlockSpec((None, 1, tf), lambda i, e, f, flags: (e, 0, f)),   # b1[e]
                pl.BlockSpec((None, tf, H), lambda i, e, f, flags: (e, f, 0)),   # w2[e]
                pl.BlockSpec((None, 1, H), lambda i, e, f, flags: (e, 0, 0)),    # b2[e]
            ],
            out_specs=pl.BlockSpec((tm, H), lambda i, e, f, flags: (i, 0)),
            scratch_shapes=[pltpu.VMEM((tm, H), jnp.float32)],
        ),
        compiler_params=pltpu.CompilerParams(
            dimension_semantics=("parallel", "arbitrary", "arbitrary"),
            vmem_limit_bytes=vmem_limit),
    )(flags, gates3, x2, w1, b1r, w2, b2r)

    return out[:T].reshape(B, S, H)


def _reference(x, selected_probs, selected_experts, w1, b1, w2, b2):
    """Pure-JAX reference mirroring the PyTorch forward (dense over experts)."""
    E = w1.shape[0]
    K = selected_probs.shape[0]
    out = jnp.zeros(x.shape, jnp.float32)
    for i in range(E):
        h = jnp.dot(x, w1[i], preferred_element_type=jnp.float32) + b1[i].astype(jnp.float32)
        h = jax.nn.gelu(h, approximate=True)
        y = jnp.dot(h.astype(x.dtype), w2[i],
                    preferred_element_type=jnp.float32) + b2[i].astype(jnp.float32)
        for j in range(K):
            gate = selected_probs[j].astype(jnp.float32) * (
                selected_experts[j] == i).astype(jnp.float32)
            out = out + gate * y
    return out.astype(x.dtype)


if __name__ == "__main__":
    # Small shapes consistent with the module's forward signature.
    B, S, H, F = 2, 64, 128, 256
    num_experts, num_shared, top_k = 4, 1, 2
    E = num_experts + num_shared          # num_experts_all
    K = top_k + num_shared                # top_k_all

    key = jax.random.PRNGKey(0)
    k_x, k_w1, k_b1, k_w2, k_b2, k_p, k_s = jax.random.split(key, 7)

    dtype = jnp.bfloat16
    x = (jax.random.normal(k_x, (B, S, H), jnp.float32) * 0.5).astype(dtype)

    # Deterministic expert parameters (E stacked 2-layer FFNs).
    w1 = (jax.random.normal(k_w1, (E, H, F), jnp.float32) * (1.0 / H ** 0.5)).astype(dtype)
    b1 = (jax.random.normal(k_b1, (E, F), jnp.float32) * 0.01).astype(dtype)
    w2 = (jax.random.normal(k_w2, (E, F, H), jnp.float32) * (1.0 / F ** 0.5)).astype(dtype)
    b2 = (jax.random.normal(k_b2, (E, H), jnp.float32) * 0.01).astype(dtype)

    # Routing: top_k routed experts with random probs + shared experts (prob 1).
    routed_probs = jax.nn.softmax(
        jax.random.normal(k_p, (top_k, B, S, 1), jnp.float32), axis=0)
    routed_exp = jax.random.randint(k_s, (top_k, B, S, 1), 0, num_experts)
    shared_probs = jnp.ones((num_shared, B, S, 1), jnp.float32)
    shared_exp = (num_experts + jnp.arange(num_shared)
                  ).reshape(num_shared, 1, 1, 1) * jnp.ones((1, B, S, 1), jnp.int32)

    selected_probs = jnp.concatenate([routed_probs, shared_probs], axis=0).astype(dtype)
    selected_experts = jnp.concatenate([routed_exp, shared_exp], axis=0).astype(jnp.int32)

    ref = _reference(x, selected_probs, selected_experts, w1, b1, w2, b2)

    # 1) default tiles (single token tile, no F tiling at these small shapes)
    out = experts_ffn(x, selected_probs, selected_experts, w1, b1, w2, b2)
    out = jax.block_until_ready(out)
    assert out.shape == (B, S, H)
    assert jnp.allclose(out.astype(jnp.float32), ref.astype(jnp.float32),
                        atol=5e-2, rtol=5e-2)

    # 2) explicit small tiles: multiple token tiles + F tiling + expert-skip path
    out2 = experts_ffn(x, selected_probs, selected_experts, w1, b1, w2, b2,
                       tm=64, tf=128)
    out2 = jax.block_until_ready(out2)
    assert jnp.allclose(out2.astype(jnp.float32), ref.astype(jnp.float32),
                        atol=5e-2, rtol=5e-2)

    # 3) ragged token count (exercises the padding path)
    xr = x[:, :13]
    spr = selected_probs[:, :, :13]
    ser = selected_experts[:, :, :13]
    refr = _reference(xr, spr, ser, w1, b1, w2, b2)
    outr = experts_ffn(xr, spr, ser, w1, b1, w2, b2, tm=16, tf=128)
    outr = jax.block_until_ready(outr)
    assert outr.shape == xr.shape
    assert jnp.allclose(outr.astype(jnp.float32), refr.astype(jnp.float32),
                        atol=5e-2, rtol=5e-2)

    print("KERNEL_OK")
</pallas_src>

<mosaic_0001>
module attributes {stable_mosaic.version = 11 : i64} {
  func.func @_moe_ffn_kernel(%arg0: i32, %arg1: i32, %arg2: i32, %arg3: memref<5x1xi32, #tpu.memory_space<smem>>, %arg4: memref<1x128x1xf32, #tpu.memory_space<vmem>>, %arg5: memref<128x128xbf16, #tpu.memory_space<vmem>>, %arg6: memref<1x128x256xbf16, #tpu.memory_space<vmem>>, %arg7: memref<1x1x256xbf16, #tpu.memory_space<vmem>>, %arg8: memref<1x256x128xbf16, #tpu.memory_space<vmem>>, %arg9: memref<1x1x128xbf16, #tpu.memory_space<vmem>>, %arg10: memref<128x128xbf16, #tpu.memory_space<vmem>>, %arg11: memref<128x128xf32, #tpu.memory_space<vmem>>) attributes {dimension_semantics = [#tpu.dimension_semantics<parallel>, #tpu.dimension_semantics<arbitrary>, #tpu.dimension_semantics<arbitrary>], iteration_bounds = array<i64: 1, 5, 1>, scalar_prefetch = 1 : i64, scratch_operands = 1 : i64, tpu.core_type = #tpu.core_type<tc>, window_params = [{transform_indices = @transform_0, window_bounds = array<i64: 1, 128, 1>}, {transform_indices = @transform_1, window_bounds = array<i64: 128, 128>}, {transform_indices = @transform_2, window_bounds = array<i64: 1, 128, 256>}, {transform_indices = @transform_3, window_bounds = array<i64: 1, 1, 256>}, {transform_indices = @transform_4, window_bounds = array<i64: 1, 256, 128>}, {transform_indices = @transform_5, window_bounds = array<i64: 1, 1, 128>}, {transform_indices = @transform_6, window_bounds = array<i64: 128, 128>}]} {
    %c0_i32 = arith.constant 0 : i32
    %0 = arith.cmpi eq, %arg1, %c0_i32 : i32
    %c0_i32_0 = arith.constant 0 : i32
    %1 = arith.cmpi eq, %arg2, %c0_i32_0 : i32
    %2 = arith.andi %0, %1 : i1
    %3 = arith.extui %2 : i1 to i32
    %c0_i32_1 = arith.constant 0 : i32
    %4 = arith.cmpi ne, %3, %c0_i32_1 : i32
    scf.if %4 {
      %cst = arith.constant 0.000000e+00 : f32
      %16 = vector.broadcast %cst : f32 to vector<128x128xf32>
      %c0 = arith.constant 0 : index
      %c0_6 = arith.constant 0 : index
      %17 = vector.load %arg11[%c0, %c0_6] : memref<128x128xf32, #tpu.memory_space<vmem>>, vector<128x128xf32>
      tpu.vector_store %arg11[%c0, %c0_6], %16 {strides = array<i32>} : memref<128x128xf32, #tpu.memory_space<vmem>>, vector<128x128xf32>,
    } else {
    }
    %5 = arith.index_cast %arg1 : i32 to index
    %6 = arith.index_cast %arg0 : i32 to index
    %7 = memref.load %arg3[%5, %6] : memref<5x1xi32, #tpu.memory_space<smem>>
    %c0_i32_2 = arith.constant 0 : i32
    %8 = arith.cmpi ne, %7, %c0_i32_2 : i32
    %9 = arith.extui %8 : i1 to i32
    %c0_i32_3 = arith.constant 0 : i32
    %10 = arith.cmpi ne, %9, %c0_i32_3 : i32
    scf.if %10 {
      %c0 = arith.constant 0 : index
      %c0_6 = arith.constant 0 : index
      %16 = vector.load %arg5[%c0, %c0_6] : memref<128x128xbf16, #tpu.memory_space<vmem>>, vector<128x128xbf16>
      %c0_7 = arith.constant 0 : index
      %c0_8 = arith.constant 0 : index
      %c0_9 = arith.constant 0 : index
      %17 = vector.load %arg4[%c0_7, %c0_8, %c0_9] : memref<1x128x1xf32, #tpu.memory_space<vmem>>, vector<1x128x1xf32>
      %18 = vector.shape_cast %17 : vector<1x128x1xf32> to vector<128x1xf32>
      %c0_10 = arith.constant 0 : index
      %c0_11 = arith.constant 0 : index
      %c0_12 = arith.constant 0 : index
      %19 = vector.load %arg6[%c0_10, %c0_11, %c0_12] : memref<1x128x256xbf16, #tpu.memory_space<vmem>>, vector<1x128x256xbf16>
      %20 = vector.shape_cast %19 : vector<1x128x256xbf16> to vector<128x256xbf16>
      %cst = arith.constant dense<0.000000e+00> : vector<128x256xf32>
      %21 = tpu.matmul %16, %20, %cst {dimension_numbers = #tpu.dot_dimension_numbers<[1], [0], [0], [1], [0, 0, 1, 1], [], []>} : vector<128x128xbf16>, vector<128x256xbf16>, vector<128x256xf32> -> vector<128x256xf32>
      %c0_13 = arith.constant 0 : index
      %c0_14 = arith.constant 0 : index
      %c0_15 = arith.constant 0 : index
      %22 = vector.load %arg7[%c0_13, %c0_14, %c0_15] : memref<1x1x256xbf16, #tpu.memory_space<vmem>>, vector<1x1x256xbf16>
      %23 = vector.shape_cast %22 : vector<1x1x256xbf16> to vector<1x256xbf16>
      %24 = arith.extf %23 : vector<1x256xbf16> to vector<1x256xf32>
      %25 = vector.broadcast %24 : vector<1x256xf32> to vector<128x256xf32>
      %26 = arith.addf %21, %25 : vector<128x256xf32>
      %27 = arith.mulf %26, %26 : vector<128x256xf32>
      %28 = arith.mulf %26, %27 : vector<128x256xf32>
      %cst_16 = arith.constant 4.471500e-02 : f32
      %29 = vector.broadcast %cst_16 : f32 to vector<128x256xf32>
      %30 = arith.mulf %29, %28 : vector<128x256xf32>
      %31 = arith.addf %26, %30 : vector<128x256xf32>
      %cst_17 = arith.constant 0.797884583 : f32
      %32 = vector.broadcast %cst_17 : f32 to vector<128x256xf32>
      %33 = arith.mulf %32, %31 : vector<128x256xf32>
      %34 = math.tanh %33 : vector<128x256xf32>
      %cst_18 = arith.constant 1.000000e+00 : f32
      %35 = vector.broadcast %cst_18 : f32 to vector<128x256xf32>
      %36 = arith.addf %35, %34 : vector<128x256xf32>
      %cst_19 = arith.constant 5.000000e-01 : f32
      %37 = vector.broadcast %cst_19 : f32 to vector<128x256xf32>
      %38 = arith.mulf %37, %36 : vector<128x256xf32>
      %39 = arith.mulf %26, %38 : vector<128x256xf32>
      %40 = arith.truncf %39 : vector<128x256xf32> to vector<128x256xbf16>
      %c0_20 = arith.constant 0 : index
      %c0_21 = arith.constant 0 : index
      %c0_22 = arith.constant 0 : index
      %41 = vector.load %arg8[%c0_20, %c0_21, %c0_22] : memref<1x256x128xbf16, #tpu.memory_space<vmem>>, vector<1x256x128xbf16>
      %42 = vector.shape_cast %41 : vector<1x256x128xbf16> to vector<256x128xbf16>
      %cst_23 = arith.constant dense<0.000000e+00> : vector<128x128xf32>
      %43 = tpu.matmul %40, %42, %cst_23 {dimension_numbers = #tpu.dot_dimension_numbers<[1], [0], [0], [1], [0, 0, 1, 1], [], []>} : vector<128x256xbf16>, vector<256x128xbf16>, vector<128x128xf32> -> vector<128x128xf32>
      %c0_24 = arith.constant 0 : index
      %c0_25 = arith.constant 0 : index
      %44 = vector.load %arg11[%c0_24, %c0_25] : memref<128x128xf32, #tpu.memory_space<vmem>>, vector<128x128xf32>
      %45 = vector.broadcast %18 : vector<128x1xf32> to vector<128x128xf32>
      %46 = arith.mulf %45, %43 : vector<128x128xf32>
      %47 = arith.addf %44, %46 : vector<128x128xf32>
      %c0_26 = arith.constant 0 : index
      %c0_27 = arith.constant 0 : index
      %48 = vector.load %arg11[%c0_26, %c0_27] : memref<128x128xf32, #tpu.memory_space<vmem>>, vector<128x128xf32>
      tpu.vector_store %arg11[%c0_26, %c0_27], %47 {strides = array<i32>} : memref<128x128xf32, #tpu.memory_space<vmem>>, vector<128x128xf32>,
      %c0_i32_28 = arith.constant 0 : i32
      %49 = arith.cmpi eq, %arg2, %c0_i32_28 : i32
      %50 = arith.extui %49 : i1 to i32
      %c0_i32_29 = arith.constant 0 : i32
      %51 = arith.cmpi ne, %50, %c0_i32_29 : i32
      scf.if %51 {
        %c0_30 = arith.constant 0 : index
        %c0_31 = arith.constant 0 : index
        %52 = vector.load %arg11[%c0_30, %c0_31] : memref<128x128xf32, #tpu.memory_space<vmem>>, vector<128x128xf32>
        %c0_32 = arith.constant 0 : index
        %c0_33 = arith.constant 0 : index
        %c0_34 = arith.constant 0 : index
        %53 = vector.load %arg9[%c0_32, %c0_33, %c0_34] : memref<1x1x128xbf16, #tpu.memory_space<vmem>>, vector<1x1x128xbf16>
        %54 = vector.shape_cast %53 : vector<1x1x128xbf16> to vector<1x128xbf16>
        %55 = arith.extf %54 : vector<1x128xbf16> to vector<1x128xf32>
        %56 = vector.broadcast %18 : vector<128x1xf32> to vector<128x128xf32>
        %57 = vector.broadcast %55 : vector<1x128xf32> to vector<128x128xf32>
        %58 = arith.mulf %56, %57 : vector<128x128xf32>
        %59 = arith.addf %52, %58 : vector<128x128xf32>
        %c0_35 = arith.constant 0 : index
        %c0_36 = arith.constant 0 : index
        %60 = vector.load %arg11[%c0_35, %c0_36] : memref<128x128xf32, #tpu.memory_space<vmem>>, vector<128x128xf32>
        tpu.vector_store %arg11[%c0_35, %c0_36], %59 {strides = array<i32>} : memref<128x128xf32, #tpu.memory_space<vmem>>, vector<128x128xf32>,
      } else {
      }
    } else {
    }
    %c4_i32 = arith.constant 4 : i32
    %11 = arith.cmpi eq, %arg1, %c4_i32 : i32
    %c0_i32_4 = arith.constant 0 : i32
    %12 = arith.cmpi eq, %arg2, %c0_i32_4 : i32
    %13 = arith.andi %11, %12 : i1
    %14 = arith.extui %13 : i1 to i32
    %c0_i32_5 = arith.constant 0 : i32
    %15 = arith.cmpi ne, %14, %c0_i32_5 : i32
    scf.if %15 {
      %c0 = arith.constant 0 : index
      %c0_6 = arith.constant 0 : index
      %16 = vector.load %arg11[%c0, %c0_6] : memref<128x128xf32, #tpu.memory_space<vmem>>, vector<128x128xf32>
      %17 = arith.truncf %16 : vector<128x128xf32> to vector<128x128xbf16>
      %c0_7 = arith.constant 0 : index
      %c0_8 = arith.constant 0 : index
      %18 = vector.load %arg10[%c0_7, %c0_8] : memref<128x128xbf16, #tpu.memory_space<vmem>>, vector<128x128xbf16>
      tpu.vector_store %arg10[%c0_7, %c0_8], %17 {strides = array<i32>} : memref<128x128xbf16, #tpu.memory_space<vmem>>, vector<128x128xbf16>,
    } else {
    }
    return
  }
  func.func @transform_0(%arg0: i32, %arg1: i32, %arg2: i32, %arg3: memref<5x1xi32, #tpu.memory_space<smem>>) -> (i32, i32, i32) {
    %c0_i32 = arith.constant 0 : i32
    %c0_i32_0 = arith.constant 0 : i32
    return %arg1, %arg0, %c0_i32 : i32, i32, i32
  }
  func.func @transform_1(%arg0: i32, %arg1: i32, %arg2: i32, %arg3: memref<5x1xi32, #tpu.memory_space<smem>>) -> (i32, i32) {
    %c0_i32 = arith.constant 0 : i32
    %c0_i32_0 = arith.constant 0 : i32
    return %arg0, %c0_i32 : i32, i32
  }
  func.func @transform_2(%arg0: i32, %arg1: i32, %arg2: i32, %arg3: memref<5x1xi32, #tpu.memory_space<smem>>) -> (i32, i32, i32) {
    %c0_i32 = arith.constant 0 : i32
    %c0_i32_0 = arith.constant 0 : i32
    return %arg1, %c0_i32, %arg2 : i32, i32, i32
  }
  func.func @transform_3(%arg0: i32, %arg1: i32, %arg2: i32, %arg3: memref<5x1xi32, #tpu.memory_space<smem>>) -> (i32, i32, i32) {
    %c0_i32 = arith.constant 0 : i32
    %c0_i32_0 = arith.constant 0 : i32
    return %arg1, %c0_i32, %arg2 : i32, i32, i32
  }
  func.func @transform_4(%arg0: i32, %arg1: i32, %arg2: i32, %arg3: memref<5x1xi32, #tpu.memory_space<smem>>) -> (i32, i32, i32) {
    %c0_i32 = arith.constant 0 : i32
    %c0_i32_0 = arith.constant 0 : i32
    return %arg1, %arg2, %c0_i32 : i32, i32, i32
  }
  func.func @transform_5(%arg0: i32, %arg1: i32, %arg2: i32, %arg3: memref<5x1xi32, #tpu.memory_space<smem>>) -> (i32, i32, i32) {
    %c0_i32 = arith.constant 0 : i32
    %c0_i32_0 = arith.constant 0 : i32
    %c0_i32_1 = arith.constant 0 : i32
    return %arg1, %c0_i32, %c0_i32_0 : i32, i32, i32
  }
  func.func @transform_6(%arg0: i32, %arg1: i32, %arg2: i32, %arg3: memref<5x1xi32, #tpu.memory_space<smem>>) -> (i32, i32) {
    %c0_i32 = arith.constant 0 : i32
    %c0_i32_0 = arith.constant 0 : i32
    return %arg0, %c0_i32 : i32, i32
  }
}

</mosaic_0001>

<llo_original>
// kernel: tpu_custom_call.1
$region0: #{tpu_custom_call.1}
  #allocation0 [shape = 'u32[]', space=smem, size = 0x4, offset = 0x4, fixed_abs, tag = 'smem constant byte address 0x4 - core index']
  #allocation1 [shape = 'u32[144,128]{1,0:T(1,128)}', space=vmem, size = 0x12000, scoped, tag = 'internal scratch']
  #allocation2 [shape = 'f32[128,128]{1,0:T(8,128)}', space=vmem, size = 0x10000, scoped, tag = 'scratch operand']
  #allocation3 [shape = 's32[1]{0}', space=sflag, size = 0x4, scoped, tag = 'scoped memory for tpu_custom_call.1']
  #allocation4 [shape = 'u8[4096]{0}', space=smem, size = 0x1000, scoped, tag = 'prefetched SMEM operand 0']
  %s0 = inlined_call_operand.vmem [shape: s32[5,1], index: 0, kind: input, shape index: {}]
  %s1 = inlined_call_operand.vmem [shape: f32[5,128,1], index: 1, kind: input, shape index: {}]
  %s2 = inlined_call_operand.hbm [shape: bf16[128,128], index: 2, kind: input, shape index: {}]
  %s3 = inlined_call_operand.vmem [shape: bf16[5,128,256], index: 3, kind: input, shape index: {}]
  %s4 = inlined_call_operand.vmem [shape: bf16[5,1,256], index: 4, kind: input, shape index: {}]
  %s5 = inlined_call_operand.hbm [shape: bf16[5,256,128], index: 5, kind: input, shape index: {}]
  %s6 = inlined_call_operand.vmem [shape: bf16[5,1,128], index: 6, kind: input, shape index: {}]
  %s7 = inlined_call_operand.hbm [shape: bf16[128,128], index: 7, kind: output, shape index: {}]
  %s8 = sld [smem:[#allocation0]]
  $region81: #{tpu_custom_call.1} parent=0
    _
  %s10 = ssub.s32 1, %s8
  %s11 = scalar_select 0, %s10, %s8
  %s12 = sshll.u32 %s0, 4
  %s13 = int_to_ptr.vmem [resolvable:$true] %s12
  %15 = dma.vmem_to_smem %s13, 128, [#allocation4], [#allocation3]
  %16 = dma.done [#allocation3], 128
  %17 = sfence
  $region1: #{tpu_custom_call.1} parent=0
    #allocation5 [shape = 'u8[32768]{0}', space=vmem, size = 0x8000, scoped, tag = 'input window, operand 2, single buffered']
    #allocation6 [shape = 's32[2]{0}', space=sflag, size = 0x8, scoped, tag = 'scoped memory for tpu_custom_call.1']
    #allocation7 [shape = 's32[2]{0}', space=sflag, size = 0x8, scoped, tag = 'scoped memory for tpu_custom_call.1']
    #allocation8 [shape = 'u8[131072]{0}', space=vmem, size = 0x20000, scoped, tag = 'input window, operand 5']
    #allocation9 [shape = 's32[2]{0}', space=sflag, size = 0x8, scoped, tag = 'scoped memory for tpu_custom_call.1']
    #allocation10 [shape = 'u8[32768]{0}', space=vmem, size = 0x8000, scoped, tag = 'output window, operand 0, single buffered']
    %18 = vsyncpa [#allocation6], 0
    %19 = vsyncpa [#allocation9], 0
    %s20 = scalar_lea.sflag [#allocation9], 1
    %21 = vsyncpa %s20, 0
    %22 = vsyncpa [#allocation7], 0
    loop: start=0, step=1, limit=7
    $region2: #{tpu_custom_call.1} parent=1 // loop_pre_header
      _
    $region3: #{tpu_custom_call.1} parent=1 // loop_header
      %s24 = sphi 0, %s28
      %p25 = scmp.ge.s32.totalorder %s24, 7
      %s31 = sphi 0, %s50
      %s32 = sphi 0, %s46
      %s33 = sphi 0, %s42
      %s34 = sphi 0, %s31
      %s35 = sphi 0, %s32
      %s36 = sphi 0, %s33
      %s37 = sphi 0, %s34
      %s38 = sphi 0, %s35
      %s39 = sphi 0, %s36
      %s55 = sphi 0, %s57
      %s58 = sphi 0, %s55
      %s59 = sphi 0, %s58
      %s75 = sphi 0, %s59
      %s81 = sphi 0, %s83
      %s84 = sphi 0, %s81
      %s85 = sphi 0, %s84
      %s101 = sphi 0, %s85
      %s109 = sphi 0, %s111
      %s112 = sphi 0, %s109
      %s113 = sphi 0, %s112
      %s129 = sphi 0, %s113
      %s137 = sphi 0, %s139
      %s140 = sphi 0, %s137
      %s141 = sphi 0, %s140
      %s157 = sphi 0, %s141
      %s165 = sphi 0, %s167
      %s168 = sphi 0, %s165
      %s169 = sphi 0, %s168
      %s185 = sphi 0, %s169
      %s191 = sphi 0, %s193
      %s194 = sphi 0, %s191
      %s195 = sphi 0, %s194
      %s211 = sphi 0, %s195
      %s217 = sphi 0, %s219
      %s220 = sphi 0, %s217
      %s221 = sphi 0, %s220
      %s237 = sphi 0, %s221
    $region4: #{tpu_custom_call.1} parent=1 // loop_header_branch
      %27 = sbr.rel (%p25) target = $region8
    $region5: #{tpu_custom_call.1} parent=1 // loop_body
      %s29 = ssub.s32 %s24, 1
      %s30 = ssub.s32 %s24, 2
      %s40 = sadd.s32 1, %s33
      %p41 = scmp.ge.s32.totalorder %s40, 1
      %s42 = scalar_select %p41, 0, %s40
      %s43 = sadd.s32 1, %s32
      %s44 = scalar_select %p41, %s43, %s32
      %p45 = scmp.ge.s32.totalorder %s44, 5
      %s46 = scalar_select %p45, 0, %s44
      %s47 = sadd.s32 1, %s31
      %s48 = scalar_select %p45, %s47, %s31
      %p49 = scmp.ge.s32.totalorder %s48, 1
      %s50 = scalar_select %p49, 0, %s48
      %s51 = ssub.s32 %s32, %s46
      %s52 = ssub.s32 %s31, %s50
      %s53 = sor.u32 %s51, %s52
      %p54 = scmp.eq.s32.totalorder %s53, 0
      %s56 = sadd.s32 %s55, 1
      %s57 = scalar_select %p54, %s55, %s56
      %p60 = pneg %p54
      %p61 = scmp.eq.s32.totalorder %s24, 4
      %p62 = por %p60, %p61
      %p63 = scmp.ne.s32.totalorder %s55, %s58
      %p64 = scmp.eq.s32.totalorder %s24, 0
      %p65 = por %p63, %p64
      %p66 = scmp.ne.s32.totalorder %s55, %s58
      %p67 = scmp.eq.s32.totalorder %s29, 4
      %p68 = por %p66, %p67
      %p69 = scmp.ne.s32.totalorder %s58, %s59
      %p70 = scmp.eq.s32.totalorder %s29, 0
      %p71 = por %p69, %p70
      %p72 = scmp.ne.s32.totalorder %s58, %s59
      %p73 = scmp.eq.s32.totalorder %s30, 4
      %p74 = por %p72, %p73
      %p76 = scmp.ne.s32.totalorder %s59, %s75
      %p77 = scmp.eq.s32.totalorder %s30, 0
      %p78 = por %p76, %p77
      %s79 = ssub.s32 %s31, %s50
      %p80 = scmp.eq.s32.totalorder %s79, 0
      %s82 = sadd.s32 %s81, 1
      %s83 = scalar_select %p80, %s81, %s82
      %p86 = pneg %p80
      %p87 = scmp.eq.s32.totalorder %s24, 4
      %p88 = por %p86, %p87
      %p89 = scmp.ne.s32.totalorder %s81, %s84
      %p90 = scmp.eq.s32.totalorder %s24, 0
      %p91 = por %p89, %p90
      %p92 = scmp.ne.s32.totalorder %s81, %s84
      %p93 = scmp.eq.s32.totalorder %s29, 4
      %p94 = por %p92, %p93
      %p95 = scmp.ne.s32.totalorder %s84, %s85
      %p96 = scmp.eq.s32.totalorder %s29, 0
      %p97 = por %p95, %p96
      %p98 = scmp.ne.s32.totalorder %s84, %s85
      %p99 = scmp.eq.s32.totalorder %s30, 4
      %p100 = por %p98, %p99
      %p102 = scmp.ne.s32.totalorder %s85, %s101
      %p103 = scmp.eq.s32.totalorder %s30, 0
      %p104 = por %p102, %p103
      %s105 = ssub.s32 %s32, %s46
      %s106 = ssub.s32 %s33, %s42
      %s107 = sor.u32 %s105, %s106
      %p108 = scmp.eq.s32.totalorder %s107, 0
      %s110 = sadd.s32 %s109, 1
      %s111 = scalar_select %p108, %s109, %s110
      %p114 = pneg %p108
      %p115 = scmp.eq.s32.totalorder %s24, 4
      %p116 = por %p114, %p115
      %p117 = scmp.ne.s32.totalorder %s109, %s112
      %p118 = scmp.eq.s32.totalorder %s24, 0
      %p119 = por %p117, %p118
      %p120 = scmp.ne.s32.totalorder %s109, %s112
      %p121 = scmp.eq.s32.totalorder %s29, 4
      %p122 = por %p120, %p121
      %p123 = scmp.ne.s32.totalorder %s112, %s113
      %p124 = scmp.eq.s32.totalorder %s29, 0
      %p125 = por %p123, %p124
      %p126 = scmp.ne.s32.totalorder %s112, %s113
      %p127 = scmp.eq.s32.totalorder %s30, 4
      %p128 = por %p126, %p127
      %p130 = scmp.ne.s32.totalorder %s113, %s129
      %p131 = scmp.eq.s32.totalorder %s30, 0
      %p132 = por %p130, %p131
      %s133 = ssub.s32 %s32, %s46
      %s134 = ssub.s32 %s33, %s42
      %s135 = sor.u32 %s133, %s134
      %p136 = scmp.eq.s32.totalorder %s135, 0
      %s138 = sadd.s32 %s137, 1
      %s139 = scalar_select %p136, %s137, %s138
      %p142 = pneg %p136
      %p143 = scmp.eq.s32.totalorder %s24, 4
      %p144 = por %p142, %p143
      %p145 = scmp.ne.s32.totalorder %s137, %s140
      %p146 = scmp.eq.s32.totalorder %s24, 0
      %p147 = por %p145, %p146
      %p148 = scmp.ne.s32.totalorder %s137, %s140
      %p149 = scmp.eq.s32.totalorder %s29, 4
      %p150 = por %p148, %p149
      %p151 = scmp.ne.s32.totalorder %s140, %s141
      %p152 = scmp.eq.s32.totalorder %s29, 0
      %p153 = por %p151, %p152
      %p154 = scmp.ne.s32.totalorder %s140, %s141
      %p155 = scmp.eq.s32.totalorder %s30, 4
      %p156 = por %p154, %p155
      %p158 = scmp.ne.s32.totalorder %s141, %s157
      %p159 = scmp.eq.s32.totalorder %s30, 0
      %p160 = por %p158, %p159
      %s161 = ssub.s32 %s32, %s46
      %s162 = ssub.s32 %s33, %s42
      %s163 = sor.u32 %s161, %s162
      %p164 = scmp.eq.s32.totalorder %s163, 0
      %s166 = sadd.s32 %s165, 1
      %s167 = scalar_select %p164, %s165, %s166
      %p170 = pneg %p164
      %p171 = scmp.eq.s32.totalorder %s24, 4
      %p172 = por %p170, %p171
      %p173 = scmp.ne.s32.totalorder %s165, %s168
      %p174 = scmp.eq.s32.totalorder %s24, 0
      %p175 = por %p173, %p174
      %p176 = scmp.ne.s32.totalorder %s165, %s168
      %p177 = scmp.eq.s32.totalorder %s29, 4
      %p178 = por %p176, %p177
      %p179 = scmp.ne.s32.totalorder %s168, %s169
      %p180 = scmp.eq.s32.totalorder %s29, 0
      %p181 = por %p179, %p180
      %p182 = scmp.ne.s32.totalorder %s168, %s169
      %p183 = scmp.eq.s32.totalorder %s30, 4
      %p184 = por %p182, %p183
      %p186 = scmp.ne.s32.totalorder %s169, %s185
      %p187 = scmp.eq.s32.totalorder %s30, 0
      %p188 = por %p186, %p187
      %s189 = ssub.s32 %s32, %s46
      %p190 = scmp.eq.s32.totalorder %s189, 0
      %s192 = sadd.s32 %s191, 1
      %s193 = scalar_select %p190, %s191, %s192
      %p196 = pneg %p190
      %p197 = scmp.eq.s32.totalorder %s24, 4
      %p198 = por %p196, %p197
      %p199 = scmp.ne.s32.totalorder %s191, %s194
      %p200 = scmp.eq.s32.totalorder %s24, 0
      %p201 = por %p199, %p200
      %p202 = scmp.ne.s32.totalorder %s191, %s194
      %p203 = scmp.eq.s32.totalorder %s29, 4
      %p204 = por %p202, %p203
      %p205 = scmp.ne.s32.totalorder %s194, %s195
      %p206 = scmp.eq.s32.totalorder %s29, 0
      %p207 = por %p205, %p206
      %p208 = scmp.ne.s32.totalorder %s194, %s195
      %p209 = scmp.eq.s32.totalorder %s30, 4
      %p210 = por %p208, %p209
      %p212 = scmp.ne.s32.totalorder %s195, %s211
      %p213 = scmp.eq.s32.totalorder %s30, 0
      %p214 = por %p212, %p213
      %s215 = ssub.s32 %s31, %s50
      %p216 = scmp.eq.s32.totalorder %s215, 0
      %s218 = sadd.s32 %s217, 1
      %s219 = scalar_select %p216, %s217, %s218
      %p222 = pneg %p216
      %p223 = scmp.eq.s32.totalorder %s24, 4
      %p224 = por %p222, %p223
      %p225 = scmp.ne.s32.totalorder %s217, %s220
      %p226 = scmp.eq.s32.totalorder %s24, 0
      %p227 = por %p225, %p226
      %p228 = scmp.ne.s32.totalorder %s217, %s220
      %p229 = scmp.eq.s32.totalorder %s29, 4
      %p230 = por %p228, %p229
      %p231 = scmp.ne.s32.totalorder %s220, %s221
      %p232 = scmp.eq.s32.totalorder %s29, 0
      %p233 = por %p231, %p232
      %p234 = scmp.ne.s32.totalorder %s220, %s221
      %p235 = scmp.eq.s32.totalorder %s30, 4
      %p236 = por %p234, %p235
      %p238 = scmp.ne.s32.totalorder %s221, %s237
      %p239 = scmp.eq.s32.totalorder %s30, 0
      %p240 = por %p238, %p239
      %p241 = scmp.le.s32.totalorder 1, %s24
      %p242 = scmp.lt.s32.totalorder %s24, 6
      %p243 = pnand %p241, %p242
      %p244 = pneg %p243
      // Predicated region
      $region9: #{tpu_custom_call.1} parent=5 // pred_check
        _
      $region10: #{tpu_custom_call.1} parent=5 // pred_check_branch
        %246 = sbr.rel (%p243) target = $region12
      $region11: #{tpu_custom_call.1} parent=5 // pred_region
        %s247 = ssub.s32 %s24, 1
        // Predicated region
        $region13: #{tpu_custom_call.1} parent=11 // pred_check
          %p248 = pneg %p97
        $region14: #{tpu_custom_call.1} parent=11 // pred_check_branch
          %250 = sbr.rel (%p248) target = $region16
        $region15: #{tpu_custom_call.1} parent=11 // pred_region
          %s251 = smul.u32 16, %s34
          %s253 = ssub.s32 1024, 1024
          %254 = vsyncadd [#allocation6], %s253
          %s255 = smul.addr %s251, 64
          %s256 = scalar_lea.hbm %s2, %s255
          %s257 = sshll.u32 [#allocation5], 4
          %s258 = int_to_ptr.vmem [resolvable:$true] %s257
          %263 = dma.hbm_to_vmem [thread:$0]  %s256, 1024, %s258, [#allocation6], 64, 64, 4
        $region16: #{tpu_custom_call.1} parent=11 // pred_fallthru
          _
      $region12: #{tpu_custom_call.1} parent=5 // pred_fallthru
        _
      %p264 = scmp.lt.s32.totalorder %s24, 5
      // Predicated region
      $region17: #{tpu_custom_call.1} parent=5 // pred_check
        %p265 = pneg %p264
      $region18: #{tpu_custom_call.1} parent=5 // pred_check_branch
        %267 = sbr.rel (%p265) target = $region20
      $region19: #{tpu_custom_call.1} parent=5 // pred_region
        // Predicated region
        $region21: #{tpu_custom_call.1} parent=19 // pred_check
          %p268 = pneg %p65
        $region22: #{tpu_custom_call.1} parent=19 // pred_check_branch
          %270 = sbr.rel (%p268) target = $region24
        $region23: #{tpu_custom_call.1} parent=19 // pred_region
          %s271 = smul.u32 16, %s31
          %p272 = scmp.lt.s32.totalorder %s32, 4
          %s273 = scalar_select %p272, %s32, 4
          %p274 = scmp.lt.s32.totalorder %s271, 15
          %s275 = scalar_select %p274, %s271, 15
          %s276 = smul.addr %s273, 16
          %s277 = sadd.s32 %s275, %s276
          %s278 = smul.addr %s277, 8
          %s279 = scalar_lea.vmem %s1, %s278
          %s280 = smul.u32 16, %s31
        $region24: #{tpu_custom_call.1} parent=19 // pred_fallthru
          _
        // Predicated region
        $region25: #{tpu_custom_call.1} parent=19 // pred_check
          %p281 = pneg %p119
        $region26: #{tpu_custom_call.1} parent=19 // pred_check_branch
          %283 = sbr.rel (%p281) target = $region28
        $region27: #{tpu_custom_call.1} parent=19 // pred_region
          %s284 = smul.u32 2, %s33
          %p285 = scmp.lt.s32.totalorder %s32, 4
          %s286 = scalar_select %p285, %s32, 4
          %p287 = scmp.lt.s32.totalorder %s284, 1
          %s288 = scalar_select %p287, %s284, 1
          %s289 = smul.addr %s286, 32
          %s290 = sadd.s32 %s288, %s289
          %s291 = smul.addr %s290, 4
          %s292 = scalar_lea.vmem %s3, %s291
          %s293 = smul.u32 2, %s33
        $region28: #{tpu_custom_call.1} parent=19 // pred_fallthru
          _
        // Predicated region
        $region29: #{tpu_custom_call.1} parent=19 // pred_check
          %p294 = pneg %p147
        $region30: #{tpu_custom_call.1} parent=19 // pred_check_branch
          %296 = sbr.rel (%p294) target = $region32
        $region31: #{tpu_custom_call.1} parent=19 // pred_region
          %s297 = smul.u32 2, %s33
          %p298 = scmp.lt.s32.totalorder %s32, 4
          %s299 = scalar_select %p298, %s32, 4
          %p300 = scmp.lt.s32.totalorder %s297, 1
          %s301 = scalar_select %p300, %s297, 1
          %s302 = smul.addr %s299, 2
          %s303 = sadd.s32 %s301, %s302
          %s304 = scalar_lea.vmem %s4, %s303
          %s305 = smul.u32 2, %s33
        $region32: #{tpu_custom_call.1} parent=19 // pred_fallthru
          _
        // Predicated region
        $region33: #{tpu_custom_call.1} parent=19 // pred_check
          %p306 = pneg %p175
        $region34: #{tpu_custom_call.1} parent=19 // pred_check_branch
          %308 = sbr.rel (%p306) target = $region36
        $region35: #{tpu_custom_call.1} parent=19 // pred_region
          %s309 = sand.u32 %s165, 1
          %s310 = scalar_lea.sflag [#allocation9], %s309
          %s311 = sand.u32 %s165, 1
          %s312 = smul.addr %s311, 128
          %s313 = scalar_lea.vmem [#allocation8], %s312
          %s314 = smul.u32 32, %s33
          %s316 = ssub.s32 2048, 2048
          %317 = vsyncadd %s310, %s316
          %s318 = smul.addr %s32, 32
          %s319 = sadd.s32 %s314, %s318
          %s320 = smul.addr %s319, 64
          %s321 = scalar_lea.hbm %s5, %s320
          %s322 = sshll.u32 %s313, 4
          %s323 = int_to_ptr.vmem [resolvable:$true] %s322
          %328 = dma.hbm_to_vmem [thread:$0]  %s321, 2048, %s323, %s310, 64, 64, 4
        $region36: #{tpu_custom_call.1} parent=19 // pred_fallthru
          _
        // Predicated region
        $region37: #{tpu_custom_call.1} parent=19 // pred_check
          %p329 = pneg %p201
        $region38: #{tpu_custom_call.1} parent=19 // pred_check_branch
          %331 = sbr.rel (%p329) target = $region40
        $region39: #{tpu_custom_call.1} parent=19 // pred_region
          %p332 = scmp.lt.s32.totalorder %s32, 4
          %s333 = scalar_select %p332, %s32, 4
          %s334 = scalar_lea.vmem %s6, %s333
        $region40: #{tpu_custom_call.1} parent=19 // pred_fallthru
          _
      $region20: #{tpu_custom_call.1} parent=5 // pred_fallthru
        _
      %p335 = scmp.le.s32.totalorder 1, %s24
      %p336 = scmp.lt.s32.totalorder %s24, 6
      %p337 = pnand %p335, %p336
      %p338 = pneg %p337
      // Predicated region
      $region41: #{tpu_custom_call.1} parent=5 // pred_check
        _
      $region42: #{tpu_custom_call.1} parent=5 // pred_check_branch
        %340 = sbr.rel (%p337) target = $region44
      $region43: #{tpu_custom_call.1} parent=5 // pred_region
        %s341 = ssub.s32 %s24, 1
        // Predicated region
        $region45: #{tpu_custom_call.1} parent=43 // pred_check
          %p342 = pneg %p97
        $region46: #{tpu_custom_call.1} parent=43 // pred_check_branch
          %344 = sbr.rel (%p342) target = $region48
        $region47: #{tpu_custom_call.1} parent=43 // pred_region
          %345 = dma.done [#allocation6], 1024
        $region48: #{tpu_custom_call.1} parent=43 // pred_fallthru
          _
        %s346 = sand.u32 %s168, 1
        %s347 = scalar_lea.sflag [#allocation9], %s346
        %s348 = sand.u32 %s168, 1
        %s349 = smul.addr %s348, 128
        %s350 = scalar_lea.vmem [#allocation8], %s349
        // Predicated region
        $region49: #{tpu_custom_call.1} parent=43 // pred_check
          %p351 = pneg %p181
        $region50: #{tpu_custom_call.1} parent=43 // pred_check_branch
          %353 = sbr.rel (%p351) target = $region52
        $region51: #{tpu_custom_call.1} parent=43 // pred_region
          %354 = dma.done %s347, 2048
        $region52: #{tpu_custom_call.1} parent=43 // pred_fallthru
          _
        %s355 = smul.u32 16, %s34
        %p356 = scmp.lt.s32.totalorder %s35, 4
        %s357 = scalar_select %p356, %s35, 4
        %p358 = scmp.lt.s32.totalorder %s355, 15
        %s359 = scalar_select %p358, %s355, 15
        %s360 = smul.addr %s357, 16
        %s361 = sadd.s32 %s359, %s360
        %s362 = smul.addr %s361, 8
        %s363 = scalar_lea.vmem %s1, %s362
        %p364 = pneg %p71
        %p365 = pneg %p68
        %p366 = pneg %p97
        %p367 = pneg %p94
        %s368 = smul.u32 2, %s36
        %p369 = scmp.lt.s32.totalorder %s35, 4
        %s370 = scalar_select %p369, %s35, 4
        %p371 = scmp.lt.s32.totalorder %s368, 1
        %s372 = scalar_select %p371, %s368, 1
        %s373 = smul.addr %s370, 32
        %s374 = sadd.s32 %s372, %s373
        %s375 = smul.addr %s374, 4
        %s376 = scalar_lea.vmem %s3, %s375
        %p377 = pneg %p125
        %p378 = pneg %p122
        %s379 = smul.u32 2, %s36
        %p380 = scmp.lt.s32.totalorder %s35, 4
        %s381 = scalar_select %p380, %s35, 4
        %p382 = scmp.lt.s32.totalorder %s379, 1
        %s383 = scalar_select %p382, %s379, 1
        %s384 = smul.addr %s381, 2
        %s385 = sadd.s32 %s383, %s384
        %s386 = scalar_lea.vmem %s4, %s385
        %p387 = pneg %p153
        %p388 = pneg %p150
        %s389 = sand.u32 %s168, 1
        %s390 = scalar_lea.sflag [#allocation9], %s389
        %s391 = sand.u32 %s168, 1
        %s392 = smul.addr %s391, 128
        %s393 = scalar_lea.vmem [#allocation8], %s392
        %p394 = pneg %p181
        %p395 = pneg %p178
        %p396 = scmp.lt.s32.totalorder %s35, 4
        %s397 = scalar_select %p396, %s35, 4
        %s398 = scalar_lea.vmem %s6, %s397
        %p399 = pneg %p207
        %p400 = pneg %p204
        %p401 = pneg %p233
        %p402 = pneg %p230
        %s403 = smul.u32 16, %s34
        %p404 = scmp.lt.s32.totalorder %s35, 4
        %s405 = scalar_select %p404, %s35, 4
        %p406 = scmp.lt.s32.totalorder %s403, 15
        %s407 = scalar_select %p406, %s403, 15
        %s408 = smul.addr %s405, 16
        %s409 = sadd.s32 %s407, %s408
        %s410 = smul.addr %s409, 8
        %s411 = scalar_lea.vmem %s1, %s410
        %s412 = smul.u32 16, %s34
        %s413 = smul.u32 16, %s34
        %s414 = smul.u32 2, %s36
        %p415 = scmp.lt.s32.totalorder %s35, 4
        %s416 = scalar_select %p415, %s35, 4
        %p417 = scmp.lt.s32.totalorder %s414, 1
        %s418 = scalar_select %p417, %s414, 1
        %s419 = smul.addr %s416, 32
        %s420 = sadd.s32 %s418, %s419
        %s421 = smul.addr %s420, 4
        %s422 = scalar_lea.vmem %s3, %s421
        %s423 = smul.u32 2, %s36
        %s424 = smul.u32 2, %s36
        %p425 = scmp.lt.s32.totalorder %s35, 4
        %s426 = scalar_select %p425, %s35, 4
        %p427 = scmp.lt.s32.totalorder %s424, 1
        %s428 = scalar_select %p427, %s424, 1
        %s429 = smul.addr %s426, 2
        %s430 = sadd.s32 %s428, %s429
        %s431 = scalar_lea.vmem %s4, %s430
        %s432 = smul.u32 2, %s36
        %s433 = smul.u32 32, %s36
        %p434 = scmp.lt.s32.totalorder %s35, 4
        %s435 = scalar_select %p434, %s35, 4
        %s436 = scalar_lea.vmem %s6, %s435
        %s437 = smul.u32 16, %s34
        %p439 = scmp.eq.s32.totalorder %s35, 0
        %p440 = scmp.eq.s32.totalorder %s36, 0
        %p441 = pnand %p439, %p440
        %p442 = pneg %p441
        // Predicated region
        $region53: #{tpu_custom_call.1} parent=43 // pred_check
          _
        $region54: #{tpu_custom_call.1} parent=43 // pred_check_branch
          %444 = sbr.rel (%p441) target = $region56
        $region55: #{tpu_custom_call.1} parent=43 // pred_region
          %445 = vst [vmem:[#allocation2] sm:$0xff] 0.0
          %446 = vst [vmem:[#allocation2 + $0x8] sm:$0xff] 0.0
          %447 = vst [vmem:[#allocation2 + $0x10] sm:$0xff] 0.0
          %448 = vst [vmem:[#allocation2 + $0x18] sm:$0xff] 0.0
          %449 = vst [vmem:[#allocation2 + $0x20] sm:$0xff] 0.0
          %450 = vst [vmem:[#allocation2 + $0x28] sm:$0xff] 0.0
          %451 = vst [vmem:[#allocation2 + $0x30] sm:$0xff] 0.0
          %452 = vst [vmem:[#allocation2 + $0x38] sm:$0xff] 0.0
          %453 = vst [vmem:[#allocation2 + $0x40] sm:$0xff] 0.0
          %454 = vst [vmem:[#allocation2 + $0x48] sm:$0xff] 0.0
          %455 = vst [vmem:[#allocation2 + $0x50] sm:$0xff] 0.0
          %456 = vst [vmem:[#allocation2 + $0x58] sm:$0xff] 0.0
          %457 = vst [vmem:[#allocation2 + $0x60] sm:$0xff] 0.0
          %458 = vst [vmem:[#allocation2 + $0x68] sm:$0xff] 0.0
          %459 = vst [vmem:[#allocation2 + $0x70] sm:$0xff] 0.0
          %460 = vst [vmem:[#allocation2 + $0x78] sm:$0xff] 0.0
        $region56: #{tpu_custom_call.1} parent=43 // pred_fallthru
          _
        %s461 = sshra.s32 %s34, 7
        %s462 = sand.u32 %s34, 127
        %s463 = sadd.s32 %s461, %s35
        %s464 = smul.u32 %s463, 128
        %s465 = sshra.s32 %s34, 7
        %s466 = sand.u32 %s34, 127
        %s467 = sadd.s32 %s464, %s466
        %s468 = sld [smem:[#allocation4 + %s467]]
        %p469 = scmp.ne.s32.totalorder %s468, 0
        // Predicated region
        $region57: #{tpu_custom_call.1} parent=43 // pred_check
          %p470 = pneg %p469
        $region58: #{tpu_custom_call.1} parent=43 // pred_check_branch
          %472 = sbr.rel (%p470) target = $region60
        $region59: #{tpu_custom_call.1} parent=43 // pred_region
          %v473 = vld [vmem:[#allocation5] sm:$0xf]
          %v474 = vld [vmem:[#allocation5 + $0x4] sm:$0xf]
          %v475 = vld [vmem:[#allocation5 + $0x8] sm:$0xf]
          %v476 = vld [vmem:[#allocation5 + $0xc] sm:$0xf]
          %v477 = vld [vmem:[#allocation5 + $0x10] sm:$0xf]
          %v478 = vld [vmem:[#allocation5 + $0x14] sm:$0xf]
          %v479 = vld [vmem:[#allocation5 + $0x18] sm:$0xf]
          %v480 = vld [vmem:[#allocation5 + $0x1c] sm:$0xf]
          %v481 = vld [vmem:[#allocation5 + $0x20] sm:$0xf]
          %v482 = vld [vmem:[#allocation5 + $0x24] sm:$0xf]
          %v483 = vld [vmem:[#allocation5 + $0x28] sm:$0xf]
          %v484 = vld [vmem:[#allocation5 + $0x2c] sm:$0xf]
          %v485 = vld [vmem:[#allocation5 + $0x30] sm:$0xf]
          %v486 = vld [vmem:[#allocation5 + $0x34] sm:$0xf]
          %v487 = vld [vmem:[#allocation5 + $0x38] sm:$0xf]
          %v488 = vld [vmem:[#allocation5 + $0x3c] sm:$0xf]
          %v489 = vld [vmem:[%s411] sm:$0xff]
          %v490 = vld [vmem:[%s411 + $0x8] sm:$0xff]
          %v491 = vld [vmem:[%s411 + $0x10] sm:$0xff]
          %v492 = vld [vmem:[%s411 + $0x18] sm:$0xff]
          %v493 = vld [vmem:[%s411 + $0x20] sm:$0xff]
          %v494 = vld [vmem:[%s411 + $0x28] sm:$0xff]
          %v495 = vld [vmem:[%s411 + $0x30] sm:$0xff]
          %v496 = vld [vmem:[%s411 + $0x38] sm:$0xff]
          %v497 = vld [vmem:[%s411 + $0x40] sm:$0xff]
          %v498 = vld [vmem:[%s411 + $0x48] sm:$0xff]
          %v499 = vld [vmem:[%s411 + $0x50] sm:$0xff]
          %v500 = vld [vmem:[%s411 + $0x58] sm:$0xff]
          %v501 = vld [vmem:[%s411 + $0x60] sm:$0xff]
          %v502 = vld [vmem:[%s411 + $0x68] sm:$0xff]
          %v503 = vld [vmem:[%s411 + $0x70] sm:$0xff]
          %v504 = vld [vmem:[%s411 + $0x78] sm:$0xff]
          %v505 = vld [vmem:[%s422] sm:$0xff]
          %v506 = vld [vmem:[%s422 + $0x8] sm:$0xff]
          %v507 = vld [vmem:[%s422 + $0x10] sm:$0xff]
          %v508 = vld [vmem:[%s422 + $0x18] sm:$0xff]
          %v509 = vld [vmem:[%s422 + $0x20] sm:$0xff]
          %v510 = vld [vmem:[%s422 + $0x28] sm:$0xff]
          %v511 = vld [vmem:[%s422 + $0x30] sm:$0xff]
          %v512 = vld [vmem:[%s422 + $0x38] sm:$0xff]
          %v513 = vld [vmem:[%s422 + $0x40] sm:$0xff]
          %v514 = vld [vmem:[%s422 + $0x48] sm:$0xff]
          %v515 = vld [vmem:[%s422 + $0x50] sm:$0xff]
          %v516 = vld [vmem:[%s422 + $0x58] sm:$0xff]
          %v517 = vld [vmem:[%s422 + $0x60] sm:$0xff]
          %v518 = vld [vmem:[%s422 + $0x68] sm:$0xff]
          %v519 = vld [vmem:[%s422 + $0x70] sm:$0xff]
          %v520 = vld [vmem:[%s422 + $0x78] sm:$0xff]
          %v521 = vld [vmem:[%s431] sm:$0x3]
          %v522 = vunpack.c.l.bf16 %v521
          %v524 = vlaneseq
          %v525 = vshrl.u32 %v524, 7
          %v526 = vsub.s32 0, %v525
          %v527 = vrot.slane %v522, %v526
          %v528 = vlaneseq
          %v529 = vshrl.u32 %v528, 7
          %v530 = vsub.s32 2, %v529
          %v531 = vrot.slane %v522, %v530
          %v534 = vlaneseq
          %v535 = vshrl.u32 %v534, 7
          %v536 = vsub.s32 0, %v535
          %v537 = vrot.slane %v527, %v536
          %v538 = vlaneseq
          %v539 = vshrl.u32 %v538, 7
          %v540 = vsub.s32 0, %v539
          %v541 = vrot.slane %v531, %v540
          %v558 = vunpack.c.l.b16 %v473
          %v559 = vunpack.c.l.b16 %v474
          %v560 = vunpack.c.l.b16 %v475
          %v561 = vunpack.c.l.b16 %v476
          %v562 = vunpack.c.l.b16 %v477
          %v563 = vunpack.c.l.b16 %v478
          %v564 = vunpack.c.l.b16 %v479
          %v565 = vunpack.c.l.b16 %v480
          %v566 = vunpack.c.l.b16 %v481
          %v567 = vunpack.c.l.b16 %v482
          %v568 = vunpack.c.l.b16 %v483
          %v569 = vunpack.c.l.b16 %v484
          %v570 = vunpack.c.l.b16 %v485
          %v571 = vunpack.c.l.b16 %v486
          %v572 = vunpack.c.l.b16 %v487
          %v573 = vunpack.c.l.b16 %v488
          %v574 = vpack.c.b16 %v559, %v558
          %v575 = vpack.c.b16 %v561, %v560
          %v576 = vpack.c.b16 %v563, %v562
          %v577 = vpack.c.b16 %v565, %v564
          %v578 = vpack.c.b16 %v567, %v566
          %v579 = vpack.c.b16 %v569, %v568
          %v580 = vpack.c.b16 %v571, %v570
          %v581 = vpack.c.b16 %v573, %v572
          %v606 = vunpack.c.l.b16 %v505
          %v607 = vunpack.c.h.b16 %v505
          %v608 = vunpack.c.l.b16 %v506
          %v609 = vunpack.c.h.b16 %v506
          %v610 = vunpack.c.l.b16 %v507
          %v611 = vunpack.c.h.b16 %v507
          %v612 = vunpack.c.l.b16 %v508
          %v613 = vunpack.c.h.b16 %v508
          %v614 = vunpack.c.l.b16 %v509
          %v615 = vunpack.c.h.b16 %v509
          %v616 = vunpack.c.l.b16 %v510
          %v617 = vunpack.c.h.b16 %v510
          %v618 = vunpack.c.l.b16 %v511
          %v619 = vunpack.c.h.b16 %v511
          %v620 = vunpack.c.l.b16 %v512
          %v621 = vunpack.c.h.b16 %v512
          %v622 = vunpack.c.l.b16 %v513
          %v623 = vunpack.c.h.b16 %v513
          %v624 = vunpack.c.l.b16 %v514
          %v625 = vunpack.c.h.b16 %v514
          %v626 = vunpack.c.l.b16 %v515
          %v627 = vunpack.c.h.b16 %v515
          %v628 = vunpack.c.l.b16 %v516
          %v629 = vunpack.c.h.b16 %v516
          %v630 = vunpack.c.l.b16 %v517
          %v631 = vunpack.c.h.b16 %v517
          %v632 = vunpack.c.l.b16 %v518
          %v633 = vunpack.c.h.b16 %v518
          %v634 = vunpack.c.l.b16 %v519
          %v635 = vunpack.c.h.b16 %v519
          %v636 = vunpack.c.l.b16 %v520
          %v637 = vunpack.c.h.b16 %v520
          %v638 = vpack.c.b16 %v608, %v606
          %v639 = vpack.c.b16 %v609, %v607
          %v640 = vpack.c.b16 %v612, %v610
          %v641 = vpack.c.b16 %v613, %v611
          %v642 = vpack.c.b16 %v616, %v614
          %v643 = vpack.c.b16 %v617, %v615
          %v644 = vpack.c.b16 %v620, %v618
          %v645 = vpack.c.b16 %v621, %v619
          %v646 = vpack.c.b16 %v624, %v622
          %v647 = vpack.c.b16 %v625, %v623
          %v648 = vpack.c.b16 %v628, %v626
          %v649 = vpack.c.b16 %v629, %v627
          %v650 = vpack.c.b16 %v632, %v630
          %v651 = vpack.c.b16 %v633, %v631
          %v652 = vpack.c.b16 %v636, %v634
          %v653 = vpack.c.b16 %v637, %v635
          %670 = vmatprep.subr.bf16.mxu0 %v639
          %671 = vmatpush1.bf16.msra.mxu0 %v638
          %672 = vmatprep.subr.bf16.mxu0 %v641
          %673 = vmatpush1.bf16.msra.mxu0 %v640
          %674 = vmatprep.subr.bf16.mxu0 %v643
          %675 = vmatpush1.bf16.msra.mxu0 %v642
          %676 = vmatprep.subr.bf16.mxu0 %v645
          %677 = vmatpush1.bf16.msra.mxu0 %v644
          %678 = vmatprep.subr.bf16.mxu0 %v647
          %679 = vmatpush1.bf16.msra.mxu0 %v646
          %680 = vmatprep.subr.bf16.mxu0 %v649
          %681 = vmatpush1.bf16.msra.mxu0 %v648
          %682 = vmatprep.subr.bf16.mxu0 %v651
          %683 = vmatpush1.bf16.msra.mxu0 %v650
          %684 = vmatprep.subr.bf16.mxu0 %v653
          %685 = vmatpush1.bf16.msra.mxu0 %v652
          %686 = vmatprep.subr.bf16.mxu0 0
          %687 = vmatpush1.bf16.msra.mxu0 0
          %688 = vmatprep.subr.bf16.mxu0 0
          %689 = vmatpush1.bf16.msra.mxu0 0
          %690 = vmatprep.subr.bf16.mxu0 0
          %691 = vmatpush1.bf16.msra.mxu0 0
          %692 = vmatprep.subr.bf16.mxu0 0
          %693 = vmatpush1.bf16.msra.mxu0 0
          %694 = vmatprep.subr.bf16.mxu0 0
          %695 = vmatpush1.bf16.msra.mxu0 0
          %696 = vmatprep.subr.bf16.mxu0 0
          %697 = vmatpush1.bf16.msra.mxu0 0
          %698 = vmatprep.subr.bf16.mxu0 0
          %699 = vmatpush1.bf16.msra.mxu0 0
          %700 = vmatprep.subr.bf16.mxu0 0
          %701 = vmatpush1.bf16.msra.mxu0 0
          %702 = vmatprep.mubr.bf16.mxu0 0
          %703 = vmatmul.mubr.bf16.gmra.mrb[0].mxu0 %v574
          %v704 = vpop.f32.mrb[0].mxu0
          %v705 = vadd.f32 %v537, %v704
          %v706 = vpop.f32.mrb[0].mxu0
          %v707 = vadd.f32 %v541, %v706
          %v708 = vpop.f32.mrb[0].mxu0
          %v709 = vadd.f32 %v537, %v708
          %v710 = vpop.f32.mrb[0].mxu0
          %v711 = vadd.f32 %v541, %v710
          %712 = vmatprep.mubr.bf16.mxu0 0
          %713 = vmatmul.mubr.bf16.gmra.mrb[0].mxu0 %v575
          %v714 = vpop.f32.mrb[0].mxu0
          %v715 = vadd.f32 %v537, %v714
          %v716 = vpop.f32.mrb[0].mxu0
          %v717 = vadd.f32 %v541, %v716
          %v718 = vpop.f32.mrb[0].mxu0
          %v719 = vadd.f32 %v537, %v718
          %v720 = vpop.f32.mrb[0].mxu0
          %v721 = vadd.f32 %v541, %v720
          %722 = vmatprep.mubr.bf16.mxu0 0
          %723 = vmatmul.mubr.bf16.gmra.mrb[0].mxu0 %v576
          %v724 = vpop.f32.mrb[0].mxu0
          %v725 = vadd.f32 %v537, %v724
          %v726 = vpop.f32.mrb[0].mxu0
          %v727 = vadd.f32 %v541, %v726
          %v728 = vpop.f32.mrb[0].mxu0
          %v729 = vadd.f32 %v537, %v728
          %v730 = vpop.f32.mrb[0].mxu0
          %v731 = vadd.f32 %v541, %v730
          %732 = vmatprep.mubr.bf16.mxu0 0
          %733 = vmatmul.mubr.bf16.gmra.mrb[0].mxu0 %v577
          %v734 = vpop.f32.mrb[0].mxu0
          %v735 = vadd.f32 %v537, %v734
          %v736 = vpop.f32.mrb[0].mxu0
          %v737 = vadd.f32 %v541, %v736
          %v738 = vpop.f32.mrb[0].mxu0
          %v739 = vadd.f32 %v537, %v738
          %v740 = vpop.f32.mrb[0].mxu0
          %v741 = vadd.f32 %v541, %v740
          %742 = vmatprep.mubr.bf16.mxu0 0
          %743 = vmatmul.mubr.bf16.gmra.mrb[0].mxu0 %v578
          %v744 = vpop.f32.mrb[0].mxu0
          %v745 = vadd.f32 %v537, %v744
          %v746 = vpop.f32.mrb[0].mxu0
          %v747 = vadd.f32 %v541, %v746
          %v748 = vpop.f32.mrb[0].mxu0
          %v749 = vadd.f32 %v537, %v748
          %v750 = vpop.f32.mrb[0].mxu0
          %v751 = vadd.f32 %v541, %v750
          %752 = vmatprep.mubr.bf16.mxu0 0
          %753 = vmatmul.mubr.bf16.gmra.mrb[0].mxu0 %v579
          %v754 = vpop.f32.mrb[0].mxu0
          %v755 = vadd.f32 %v537, %v754
          %v756 = vpop.f32.mrb[0].mxu0
          %v757 = vadd.f32 %v541, %v756
          %v758 = vpop.f32.mrb[0].mxu0
          %v759 = vadd.f32 %v537, %v758
          %v760 = vpop.f32.mrb[0].mxu0
          %v761 = vadd.f32 %v541, %v760
          %762 = vmatprep.mubr.bf16.mxu0 0
          %763 = vmatmul.mubr.bf16.gmra.mrb[0].mxu0 %v580
          %v764 = vpop.f32.mrb[0].mxu0
          %v765 = vadd.f32 %v537, %v764
          %v766 = vpop.f32.mrb[0].mxu0
          %v767 = vadd.f32 %v541, %v766
          %v768 = vpop.f32.mrb[0].mxu0
          %v769 = vadd.f32 %v537, %v768
          %v770 = vpop.f32.mrb[0].mxu0
          %v771 = vadd.f32 %v541, %v770
          %772 = vmatprep.mubr.bf16.mxu0 0
          %773 = vmatmul.mubr.bf16.gmra.mrb[0].mxu0 %v581
          %v774 = vpop.f32.mrb[0].mxu0
          %v775 = vadd.f32 %v537, %v774
          %v776 = vpop.f32.mrb[0].mxu0
          %v777 = vadd.f32 %v541, %v776
          %v778 = vpop.f32.mrb[0].mxu0
          %v779 = vadd.f32 %v537, %v778
          %v780 = vpop.f32.mrb[0].mxu0
          %v781 = vadd.f32 %v541, %v780
          %782 = vdwg.mxu0
          %v783 = vmul.f32 %v705, %v705
          %v784 = vmul.f32 %v707, %v707
          %v785 = vmul.f32 %v709, %v709
          %v786 = vmul.f32 %v711, %v711
          %v787 = vmul.f32 %v715, %v715
          %v788 = vmul.f32 %v717, %v717
          %v789 = vmul.f32 %v719, %v719
          %v790 = vmul.f32 %v721, %v721
          %v791 = vmul.f32 %v725, %v725
          %v792 = vmul.f32 %v727, %v727
          %v793 = vmul.f32 %v729, %v729
          %v794 = vmul.f32 %v731, %v731
          %v795 = vmul.f32 %v735, %v735
          %v796 = vmul.f32 %v737, %v737
          %v797 = vmul.f32 %v739, %v739
          %v798 = vmul.f32 %v741, %v741
          %v799 = vmul.f32 %v745, %v745
          %v800 = vmul.f32 %v747, %v747
          %v801 = vmul.f32 %v749, %v749
          %v802 = vmul.f32 %v751, %v751
          %v803 = vmul.f32 %v755, %v755
          %v804 = vmul.f32 %v757, %v757
          %v805 = vmul.f32 %v759, %v759
          %v806 = vmul.f32 %v761, %v761
          %v807 = vmul.f32 %v765, %v765
          %v808 = vmul.f32 %v767, %v767
          %v809 = vmul.f32 %v769, %v769
          %v810 = vmul.f32 %v771, %v771
          %v811 = vmul.f32 %v775, %v775
          %v812 = vmul.f32 %v777, %v777
          %v813 = vmul.f32 %v779, %v779
          %v814 = vmul.f32 %v781, %v781
          %v815 = vmul.f32 %v705, %v783
          %v816 = vmul.f32 %v707, %v784
          %v817 = vmul.f32 %v709, %v785
          %v818 = vmul.f32 %v711, %v786
          %v819 = vmul.f32 %v715, %v787
          %v820 = vmul.f32 %v717, %v788
          %v821 = vmul.f32 %v719, %v789
          %v822 = vmul.f32 %v721, %v790
          %v823 = vmul.f32 %v725, %v791
          %v824 = vmul.f32 %v727, %v792
          %v825 = vmul.f32 %v729, %v793
          %v826 = vmul.f32 %v731, %v794
          %v827 = vmul.f32 %v735, %v795
          %v828 = vmul.f32 %v737, %v796
          %v829 = vmul.f32 %v739, %v797
          %v830 = vmul.f32 %v741, %v798
          %v831 = vmul.f32 %v745, %v799
          %v832 = vmul.f32 %v747, %v800
          %v833 = vmul.f32 %v749, %v801
          %v834 = vmul.f32 %v751, %v802
          %v835 = vmul.f32 %v755, %v803
          %v836 = vmul.f32 %v757, %v804
          %v837 = vmul.f32 %v759, %v805
          %v838 = vmul.f32 %v761, %v806
          %v839 = vmul.f32 %v765, %v807
          %v840 = vmul.f32 %v767, %v808
          %v841 = vmul.f32 %v769, %v809
          %v842 = vmul.f32 %v771, %v810
          %v843 = vmul.f32 %v775, %v811
          %v844 = vmul.f32 %v777, %v812
          %v845 = vmul.f32 %v779, %v813
          %v846 = vmul.f32 %v781, %v814
          %v847 = vmul.f32 %v815, 0.044715
          %v848 = vmul.f32 %v816, 0.044715
          %v849 = vmul.f32 %v817, 0.044715
          %v850 = vmul.f32 %v818, 0.044715
          %v851 = vmul.f32 %v819, 0.044715
          %v852 = vmul.f32 %v820, 0.044715
          %v853 = vmul.f32 %v821, 0.044715
          %v854 = vmul.f32 %v822, 0.044715
          %v855 = vmul.f32 %v823, 0.044715
          %v856 = vmul.f32 %v824, 0.044715
          %v857 = vmul.f32 %v825, 0.044715
          %v858 = vmul.f32 %v826, 0.044715
          %v859 = vmul.f32 %v827, 0.044715
          %v860 = vmul.f32 %v828, 0.044715
          %v861 = vmul.f32 %v829, 0.044715
          %v862 = vmul.f32 %v830, 0.044715
          %v863 = vmul.f32 %v831, 0.044715
          %v864 = vmul.f32 %v832, 0.044715
          %v865 = vmul.f32 %v833, 0.044715
          %v866 = vmul.f32 %v834, 0.044715
          %v867 = vmul.f32 %v835, 0.044715
          %v868 = vmul.f32 %v836, 0.044715
          %v869 = vmul.f32 %v837, 0.044715
          %v870 = vmul.f32 %v838, 0.044715
          %v871 = vmul.f32 %v839, 0.044715
          %v872 = vmul.f32 %v840, 0.044715
          %v873 = vmul.f32 %v841, 0.044715
          %v874 = vmul.f32 %v842, 0.044715
          %v875 = vmul.f32 %v843, 0.044715
          %v876 = vmul.f32 %v844, 0.044715
          %v877 = vmul.f32 %v845, 0.044715
          %v878 = vmul.f32 %v846, 0.044715
          %v879 = vadd.f32 %v705, %v847
          %v880 = vadd.f32 %v707, %v848
          %v881 = vadd.f32 %v709, %v849
          %v882 = vadd.f32 %v711, %v850
          %v883 = vadd.f32 %v715, %v851
          %v884 = vadd.f32 %v717, %v852
          %v885 = vadd.f32 %v719, %v853
          %v886 = vadd.f32 %v721, %v854
          %v887 = vadd.f32 %v725, %v855
          %v888 = vadd.f32 %v727, %v856
          %v889 = vadd.f32 %v729, %v857
          %v890 = vadd.f32 %v731, %v858
          %v891 = vadd.f32 %v735, %v859
          %v892 = vadd.f32 %v737, %v860
          %v893 = vadd.f32 %v739, %v861
          %v894 = vadd.f32 %v741, %v862
          %v895 = vadd.f32 %v745, %v863
          %v896 = vadd.f32 %v747, %v864
          %v897 = vadd.f32 %v749, %v865
          %v898 = vadd.f32 %v751, %v866
          %v899 = vadd.f32 %v755, %v867
          %v900 = vadd.f32 %v757, %v868
          %v901 = vadd.f32 %v759, %v869
          %v902 = vadd.f32 %v761, %v870
          %v903 = vadd.f32 %v765, %v871
          %v904 = vadd.f32 %v767, %v872
          %v905 = vadd.f32 %v769, %v873
          %v906 = vadd.f32 %v771, %v874
          %v907 = vadd.f32 %v775, %v875
          %v908 = vadd.f32 %v777, %v876
          %v909 = vadd.f32 %v779, %v877
          %v910 = vadd.f32 %v781, %v878
          %v911 = vmul.f32 %v879, 0.7978846
          %v912 = vmul.f32 %v880, 0.7978846
          %v913 = vmul.f32 %v881, 0.7978846
          %v914 = vmul.f32 %v882, 0.7978846
          %v915 = vmul.f32 %v883, 0.7978846
          %v916 = vmul.f32 %v884, 0.7978846
          %v917 = vmul.f32 %v885, 0.7978846
          %v918 = vmul.f32 %v886, 0.7978846
          %v919 = vmul.f32 %v887, 0.7978846
          %v920 = vmul.f32 %v888, 0.7978846
          %v921 = vmul.f32 %v889, 0.7978846
          %v922 = vmul.f32 %v890, 0.7978846
          %v923 = vmul.f32 %v891, 0.7978846
          %v924 = vmul.f32 %v892, 0.7978846
          %v925 = vmul.f32 %v893, 0.7978846
          %v926 = vmul.f32 %v894, 0.7978846
          %v927 = vmul.f32 %v895, 0.7978846
          %v928 = vmul.f32 %v896, 0.7978846
          %v929 = vmul.f32 %v897, 0.7978846
          %v930 = vmul.f32 %v898, 0.7978846
          %v931 = vmul.f32 %v899, 0.7978846
          %v932 = vmul.f32 %v900, 0.7978846
          %v933 = vmul.f32 %v901, 0.7978846
          %v934 = vmul.f32 %v902, 0.7978846
          %v935 = vmul.f32 %v903, 0.7978846
          %v936 = vmul.f32 %v904, 0.7978846
          %v937 = vmul.f32 %v905, 0.7978846
          %v938 = vmul.f32 %v906, 0.7978846
          %v939 = vmul.f32 %v907, 0.7978846
          %v940 = vmul.f32 %v908, 0.7978846
          %v941 = vmul.f32 %v909, 0.7978846
          %v942 = vmul.f32 %v910, 0.7978846
          %v943 = vtanh.pop %v911
          %v944 = vtanh.pop %v912
          %v945 = vtanh.pop %v913
          %v946 = vtanh.pop %v914
          %v947 = vtanh.pop %v915
          %v948 = vtanh.pop %v916
          %v949 = vtanh.pop %v917
          %v950 = vtanh.pop %v918
          %v951 = vtanh.pop %v919
          %v952 = vtanh.pop %v920
          %v953 = vtanh.pop %v921
          %v954 = vtanh.pop %v922
          %v955 = vtanh.pop %v923
          %v956 = vtanh.pop %v924
          %v957 = vtanh.pop %v925
          %v958 = vtanh.pop %v926
          %v959 = vtanh.pop %v927
          %v960 = vtanh.pop %v928
          %v961 = vtanh.pop %v929
          %v962 = vtanh.pop %v930
          %v963 = vtanh.pop %v931
          %v964 = vtanh.pop %v932
          %v965 = vtanh.pop %v933
          %v966 = vtanh.pop %v934
          %v967 = vtanh.pop %v935
          %v968 = vtanh.pop %v936
          %v969 = vtanh.pop %v937
          %v970 = vtanh.pop %v938
          %v971 = vtanh.pop %v939
          %v972 = vtanh.pop %v940
          %v973 = vtanh.pop %v941
          %v974 = vtanh.pop %v942
          %v975 = vadd.f32 %v943, 1.0
          %v976 = vadd.f32 %v944, 1.0
          %v977 = vadd.f32 %v945, 1.0
          %v978 = vadd.f32 %v946, 1.0
          %v979 = vadd.f32 %v947, 1.0
          %v980 = vadd.f32 %v948, 1.0
          %v981 = vadd.f32 %v949, 1.0
          %v982 = vadd.f32 %v950, 1.0
          %v983 = vadd.f32 %v951, 1.0
          %v984 = vadd.f32 %v952, 1.0
          %v985 = vadd.f32 %v953, 1.0
          %v986 = vadd.f32 %v954, 1.0
          %v987 = vadd.f32 %v955, 1.0
          %v988 = vadd.f32 %v956, 1.0
          %v989 = vadd.f32 %v957, 1.0
          %v990 = vadd.f32 %v958, 1.0
          %v991 = vadd.f32 %v959, 1.0
          %v992 = vadd.f32 %v960, 1.0
          %v993 = vadd.f32 %v961, 1.0
          %v994 = vadd.f32 %v962, 1.0
          %v995 = vadd.f32 %v963, 1.0
          %v996 = vadd.f32 %v964, 1.0
          %v997 = vadd.f32 %v965, 1.0
          %v998 = vadd.f32 %v966, 1.0
          %v999 = vadd.f32 %v967, 1.0
          %v1000 = vadd.f32 %v968, 1.0
          %v1001 = vadd.f32 %v969, 1.0
          %v1002 = vadd.f32 %v970, 1.0
          %v1003 = vadd.f32 %v971, 1.0
          %v1004 = vadd.f32 %v972, 1.0
          %v1005 = vadd.f32 %v973, 1.0
          %v1006 = vadd.f32 %v974, 1.0
          %v1007 = vmul.f32 %v975, 0.5
          %v1008 = vmul.f32 %v976, 0.5
          %v1009 = vmul.f32 %v977, 0.5
          %v1010 = vmul.f32 %v978, 0.5
          %v1011 = vmul.f32 %v979, 0.5
          %v1012 = vmul.f32 %v980, 0.5
          %v1013 = vmul.f32 %v981, 0.5
          %v1014 = vmul.f32 %v982, 0.5
          %v1015 = vmul.f32 %v983, 0.5
          %v1016 = vmul.f32 %v984, 0.5
          %v1017 = vmul.f32 %v985, 0.5
          %v1018 = vmul.f32 %v986, 0.5
          %v1019 = vmul.f32 %v987, 0.5
          %v1020 = vmul.f32 %v988, 0.5
          %v1021 = vmul.f32 %v989, 0.5
          %v1022 = vmul.f32 %v990, 0.5
          %v1023 = vmul.f32 %v991, 0.5
          %v1024 = vmul.f32 %v992, 0.5
          %v1025 = vmul.f32 %v993, 0.5
          %v1026 = vmul.f32 %v994, 0.5
          %v1027 = vmul.f32 %v995, 0.5
          %v1028 = vmul.f32 %v996, 0.5
          %v1029 = vmul.f32 %v997, 0.5
          %v1030 = vmul.f32 %v998, 0.5
          %v1031 = vmul.f32 %v999, 0.5
          %v1032 = vmul.f32 %v1000, 0.5
          %v1033 = vmul.f32 %v1001, 0.5
          %v1034 = vmul.f32 %v1002, 0.5
          %v1035 = vmul.f32 %v1003, 0.5
          %v1036 = vmul.f32 %v1004, 0.5
          %v1037 = vmul.f32 %v1005, 0.5
          %v1038 = vmul.f32 %v1006, 0.5
          %v1039 = vmul.f32 %v705, %v1007
          %v1040 = vmul.f32 %v707, %v1008
          %v1041 = vmul.f32 %v709, %v1009
          %v1042 = vmul.f32 %v711, %v1010
          %v1043 = vmul.f32 %v715, %v1011
          %v1044 = vmul.f32 %v717, %v1012
          %v1045 = vmul.f32 %v719, %v1013
          %v1046 = vmul.f32 %v721, %v1014
          %v1047 = vmul.f32 %v725, %v1015
          %v1048 = vmul.f32 %v727, %v1016
          %v1049 = vmul.f32 %v729, %v1017
          %v1050 = vmul.f32 %v731, %v1018
          %v1051 = vmul.f32 %v735, %v1019
          %v1052 = vmul.f32 %v737, %v1020
          %v1053 = vmul.f32 %v739, %v1021
          %v1054 = vmul.f32 %v741, %v1022
          %v1055 = vmul.f32 %v745, %v1023
          %v1056 = vmul.f32 %v747, %v1024
          %v1057 = vmul.f32 %v749, %v1025
          %v1058 = vmul.f32 %v751, %v1026
          %v1059 = vmul.f32 %v755, %v1027
          %v1060 = vmul.f32 %v757, %v1028
          %v1061 = vmul.f32 %v759, %v1029
          %v1062 = vmul.f32 %v761, %v1030
          %v1063 = vmul.f32 %v765, %v1031
          %v1064 = vmul.f32 %v767, %v1032
          %v1065 = vmul.f32 %v769, %v1033
          %v1066 = vmul.f32 %v771, %v1034
          %v1067 = vmul.f32 %v775, %v1035
          %v1068 = vmul.f32 %v777, %v1036
          %v1069 = vmul.f32 %v779, %v1037
          %v1070 = vmul.f32 %v781, %v1038
          %v1071 = vpack.c.bf16 %v1041, %v1039
          %v1072 = vpack.c.bf16 %v1042, %v1040
          %v1073 = vpack.c.bf16 %v1045, %v1043
          %v1074 = vpack.c.bf16 %v1046, %v1044
          %v1075 = vpack.c.bf16 %v1049, %v1047
          %v1076 = vpack.c.bf16 %v1050, %v1048
          %v1077 = vpack.c.bf16 %v1053, %v1051
          %v1078 = vpack.c.bf16 %v1054, %v1052
          %v1079 = vpack.c.bf16 %v1057, %v1055
          %v1080 = vpack.c.bf16 %v1058, %v1056
          %v1081 = vpack.c.bf16 %v1061, %v1059
          %v1082 = vpack.c.bf16 %v1062, %v1060
          %v1083 = vpack.c.bf16 %v1065, %v1063
          %v1084 = vpack.c.bf16 %v1066, %v1064
          %v1085 = vpack.c.bf16 %v1069, %v1067
          %v1086 = vpack.c.bf16 %v1070, %v1068
          %v1087 = vld [vmem:[%s350] sm:$0xf]
          %v1088 = vld [vmem:[%s350 + $0x4] sm:$0xf]
          %v1089 = vld [vmem:[%s350 + $0x8] sm:$0xf]
          %v1090 = vld [vmem:[%s350 + $0xc] sm:$0xf]
          %v1091 = vld [vmem:[%s350 + $0x10] sm:$0xf]
          %v1092 = vld [vmem:[%s350 + $0x14] sm:$0xf]
          %v1093 = vld [vmem:[%s350 + $0x18] sm:$0xf]
          %v1094 = vld [vmem:[%s350 + $0x1c] sm:$0xf]
          %v1095 = vld [vmem:[%s350 + $0x20] sm:$0xf]
          %v1096 = vld [vmem:[%s350 + $0x24] sm:$0xf]
          %v1097 = vld [vmem:[%s350 + $0x28] sm:$0xf]
          %v1098 = vld [vmem:[%s350 + $0x2c] sm:$0xf]
          %v1099 = vld [vmem:[%s350 + $0x30] sm:$0xf]
          %v1100 = vld [vmem:[%s350 + $0x34] sm:$0xf]
          %v1101 = vld [vmem:[%s350 + $0x38] sm:$0xf]
          %v1102 = vld [vmem:[%s350 + $0x3c] sm:$0xf]
          %v1103 = vld [vmem:[%s350 + $0x40] sm:$0xf]
          %v1104 = vld [vmem:[%s350 + $0x44] sm:$0xf]
          %v1105 = vld [vmem:[%s350 + $0x48] sm:$0xf]
          %v1106 = vld [vmem:[%s350 + $0x4c] sm:$0xf]
          %v1107 = vld [vmem:[%s350 + $0x50] sm:$0xf]
          %v1108 = vld [vmem:[%s350 + $0x54] sm:$0xf]
          %v1109 = vld [vmem:[%s350 + $0x58] sm:$0xf]
          %v1110 = vld [vmem:[%s350 + $0x5c] sm:$0xf]
          %v1111 = vld [vmem:[%s350 + $0x60] sm:$0xf]
          %v1112 = vld [vmem:[%s350 + $0x64] sm:$0xf]
          %v1113 = vld [vmem:[%s350 + $0x68] sm:$0xf]
          %v1114 = vld [vmem:[%s350 + $0x6c] sm:$0xf]
          %v1115 = vld [vmem:[%s350 + $0x70] sm:$0xf]
          %v1116 = vld [vmem:[%s350 + $0x74] sm:$0xf]
          %v1117 = vld [vmem:[%s350 + $0x78] sm:$0xf]
          %v1118 = vld [vmem:[%s350 + $0x7c] sm:$0xf]
          %v1151 = vunpack.c.l.b16 %v1087
          %v1152 = vunpack.c.l.b16 %v1088
          %v1153 = vunpack.c.l.b16 %v1089
          %v1154 = vunpack.c.l.b16 %v1090
          %v1155 = vunpack.c.l.b16 %v1091
          %v1156 = vunpack.c.l.b16 %v1092
          %v1157 = vunpack.c.l.b16 %v1093
          %v1158 = vunpack.c.l.b16 %v1094
          %v1159 = vunpack.c.l.b16 %v1095
          %v1160 = vunpack.c.l.b16 %v1096
          %v1161 = vunpack.c.l.b16 %v1097
          %v1162 = vunpack.c.l.b16 %v1098
          %v1163 = vunpack.c.l.b16 %v1099
          %v1164 = vunpack.c.l.b16 %v1100
          %v1165 = vunpack.c.l.b16 %v1101
          %v1166 = vunpack.c.l.b16 %v1102
          %v1167 = vunpack.c.l.b16 %v1103
          %v1168 = vunpack.c.l.b16 %v1104
          %v1169 = vunpack.c.l.b16 %v1105
          %v1170 = vunpack.c.l.b16 %v1106
          %v1171 = vunpack.c.l.b16 %v1107
          %v1172 = vunpack.c.l.b16 %v1108
          %v1173 = vunpack.c.l.b16 %v1109
          %v1174 = vunpack.c.l.b16 %v1110
          %v1175 = vunpack.c.l.b16 %v1111
          %v1176 = vunpack.c.l.b16 %v1112
          %v1177 = vunpack.c.l.b16 %v1113
          %v1178 = vunpack.c.l.b16 %v1114
          %v1179 = vunpack.c.l.b16 %v1115
          %v1180 = vunpack.c.l.b16 %v1116
          %v1181 = vunpack.c.l.b16 %v1117
          %v1182 = vunpack.c.l.b16 %v1118
          %v1183 = vpack.c.b16 %v1152, %v1151
          %v1184 = vpack.c.b16 %v1154, %v1153
          %v1185 = vpack.c.b16 %v1156, %v1155
          %v1186 = vpack.c.b16 %v1158, %v1157
          %v1187 = vpack.c.b16 %v1160, %v1159
          %v1188 = vpack.c.b16 %v1162, %v1161
          %v1189 = vpack.c.b16 %v1164, %v1163
          %v1190 = vpack.c.b16 %v1166, %v1165
          %v1191 = vpack.c.b16 %v1168, %v1167
          %v1192 = vpack.c.b16 %v1170, %v1169
          %v1193 = vpack.c.b16 %v1172, %v1171
          %v1194 = vpack.c.b16 %v1174, %v1173
          %v1195 = vpack.c.b16 %v1176, %v1175
          %v1196 = vpack.c.b16 %v1178, %v1177
          %v1197 = vpack.c.b16 %v1180, %v1179
          %v1198 = vpack.c.b16 %v1182, %v1181
          %1215 = vmatprep.subr.bf16.mxu0 0
          %1216 = vmatpush1.bf16.msra.mxu0 %v1183
          %1217 = vmatprep.subr.bf16.mxu0 0
          %1218 = vmatpush1.bf16.msra.mxu0 %v1184
          %1219 = vmatprep.subr.bf16.mxu0 0
          %1220 = vmatpush1.bf16.msra.mxu0 %v1185
          %1221 = vmatprep.subr.bf16.mxu0 0
          %1222 = vmatpush1.bf16.msra.mxu0 %v1186
          %1223 = vmatprep.subr.bf16.mxu0 0
          %1224 = vmatpush1.bf16.msra.mxu0 %v1187
          %1225 = vmatprep.subr.bf16.mxu0 0
          %1226 = vmatpush1.bf16.msra.mxu0 %v1188
          %1227 = vmatprep.subr.bf16.mxu0 0
          %1228 = vmatpush1.bf16.msra.mxu0 %v1189
          %1229 = vmatprep.subr.bf16.mxu0 0
          %1230 = vmatpush1.bf16.msra.mxu0 %v1190
          %1231 = vmatprep.subr.bf16.mxu0 0
          %1232 = vmatpush1.bf16.msra.mxu0 %v1191
          %1233 = vmatprep.subr.bf16.mxu0 0
          %1234 = vmatpush1.bf16.msra.mxu0 %v1192
          %1235 = vmatprep.subr.bf16.mxu0 0
          %1236 = vmatpush1.bf16.msra.mxu0 %v1193
          %1237 = vmatprep.subr.bf16.mxu0 0
          %1238 = vmatpush1.bf16.msra.mxu0 %v1194
          %1239 = vmatprep.subr.bf16.mxu0 0
          %1240 = vmatpush1.bf16.msra.mxu0 %v1195
          %1241 = vmatprep.subr.bf16.mxu0 0
          %1242 = vmatpush1.bf16.msra.mxu0 %v1196
          %1243 = vmatprep.subr.bf16.mxu0 0
          %1244 = vmatpush1.bf16.msra.mxu0 %v1197
          %1245 = vmatprep.subr.bf16.mxu0 0
          %1246 = vmatpush1.bf16.msra.mxu0 %v1198
          %1247 = vmatprep.mubr.bf16.mxu0 %v1072
          %1248 = vmatmul.mubr.bf16.gmra.mrb[0].mxu0 %v1071
          %v1249 = vpop.f32.mrb[0].mxu0
          %v1250 = vadd.f32 0.0, %v1249
          %v1251 = vpop.f32.mrb[0].mxu0
          %v1252 = vpop.f32.mrb[0].mxu0
          %v1253 = vadd.f32 0.0, %v1252
          %v1254 = vpop.f32.mrb[0].mxu0
          %1255 = vmatprep.mubr.bf16.mxu0 %v1074
          %1256 = vmatmul.mubr.bf16.gmra.mrb[0].mxu0 %v1073
          %v1257 = vpop.f32.mrb[0].mxu0
          %v1258 = vadd.f32 0.0, %v1257
          %v1259 = vpop.f32.mrb[0].mxu0
          %v1260 = vpop.f32.mrb[0].mxu0
          %v1261 = vadd.f32 0.0, %v1260
          %v1262 = vpop.f32.mrb[0].mxu0
          %1263 = vmatprep.mubr.bf16.mxu0 %v1076
          %1264 = vmatmul.mubr.bf16.gmra.mrb[0].mxu0 %v1075
          %v1265 = vpop.f32.mrb[0].mxu0
          %v1266 = vadd.f32 0.0, %v1265
          %v1267 = vpop.f32.mrb[0].mxu0
          %v1268 = vpop.f32.mrb[0].mxu0
          %v1269 = vadd.f32 0.0, %v1268
          %v1270 = vpop.f32.mrb[0].mxu0
          %1271 = vmatprep.mubr.bf16.mxu0 %v1078
          %1272 = vmatmul.mubr.bf16.gmra.mrb[0].mxu0 %v1077
          %v1273 = vpop.f32.mrb[0].mxu0
          %v1274 = vadd.f32 0.0, %v1273
          %v1275 = vpop.f32.mrb[0].mxu0
          %v1276 = vpop.f32.mrb[0].mxu0
          %v1277 = vadd.f32 0.0, %v1276
          %v1278 = vpop.f32.mrb[0].mxu0
          %1279 = vmatprep.mubr.bf16.mxu0 %v1080
          %1280 = vmatmul.mubr.bf16.gmra.mrb[0].mxu0 %v1079
          %v1281 = vpop.f32.mrb[0].mxu0
          %v1282 = vadd.f32 0.0, %v1281
          %v1283 = vpop.f32.mrb[0].mxu0
          %v1284 = vpop.f32.mrb[0].mxu0
          %v1285 = vadd.f32 0.0, %v1284
          %v1286 = vpop.f32.mrb[0].mxu0
          %1287 = vmatprep.mubr.bf16.mxu0 %v1082
          %1288 = vmatmul.mubr.bf16.gmra.mrb[0].mxu0 %v1081
          %v1289 = vpop.f32.mrb[0].mxu0
          %v1290 = vadd.f32 0.0, %v1289
          %v1291 = vpop.f32.mrb[0].mxu0
          %v1292 = vpop.f32.mrb[0].mxu0
          %v1293 = vadd.f32 0.0, %v1292
          %v1294 = vpop.f32.mrb[0].mxu0
          %1295 = vmatprep.mubr.bf16.mxu0 %v1084
          %1296 = vmatmul.mubr.bf16.gmra.mrb[0].mxu0 %v1083
          %v1297 = vpop.f32.mrb[0].mxu0
          %v1298 = vadd.f32 0.0, %v1297
          %v1299 = vpop.f32.mrb[0].mxu0
          %v1300 = vpop.f32.mrb[0].mxu0
          %v1301 = vadd.f32 0.0, %v1300
          %v1302 = vpop.f32.mrb[0].mxu0
          %1303 = vmatprep.mubr.bf16.mxu0 %v1086
          %1304 = vmatmul.mubr.bf16.gmra.mrb[0].mxu0 %v1085
          %v1305 = vpop.f32.mrb[0].mxu0
          %v1306 = vadd.f32 0.0, %v1305
          %v1307 = vpop.f32.mrb[0].mxu0
          %v1308 = vpop.f32.mrb[0].mxu0
          %v1309 = vadd.f32 0.0, %v1308
          %v1310 = vpop.f32.mrb[0].mxu0
          %1311 = vdwg.mxu0
          %v1312 = vld [vmem:[#allocation2] sm:$0xff]
          %v1313 = vld [vmem:[#allocation2 + $0x8] sm:$0xff]
          %v1314 = vld [vmem:[#allocation2 + $0x10] sm:$0xff]
          %v1315 = vld [vmem:[#allocation2 + $0x18] sm:$0xff]
          %v1316 = vld [vmem:[#allocation2 + $0x20] sm:$0xff]
          %v1317 = vld [vmem:[#allocation2 + $0x28] sm:$0xff]
          %v1318 = vld [vmem:[#allocation2 + $0x30] sm:$0xff]
          %v1319 = vld [vmem:[#allocation2 + $0x38] sm:$0xff]
          %v1320 = vld [vmem:[#allocation2 + $0x40] sm:$0xff]
          %v1321 = vld [vmem:[#allocation2 + $0x48] sm:$0xff]
          %v1322 = vld [vmem:[#allocation2 + $0x50] sm:$0xff]
          %v1323 = vld [vmem:[#allocation2 + $0x58] sm:$0xff]
          %v1324 = vld [vmem:[#allocation2 + $0x60] sm:$0xff]
          %v1325 = vld [vmem:[#allocation2 + $0x68] sm:$0xff]
          %v1326 = vld [vmem:[#allocation2 + $0x70] sm:$0xff]
          %v1327 = vld [vmem:[#allocation2 + $0x78] sm:$0xff]
          %1329 = vset.pattern.permute.xlu0 0
          %1330 = vperm.xlu0 %1329, %v489
          %v1331 = vpop.permute.xlu0 %1330
          %1334 = vset.pattern.permute.xlu0 0
          %1335 = vperm.xlu0 %1334, %v490
          %v1336 = vpop.permute.xlu0 %1335
          %1339 = vset.pattern.permute.xlu0 0
          %1340 = vperm.xlu0 %1339, %v491
          %v1341 = vpop.permute.xlu0 %1340
          %1344 = vset.pattern.permute.xlu0 0
          %1345 = vperm.xlu0 %1344, %v492
          %v1346 = vpop.permute.xlu0 %1345
          %1349 = vset.pattern.permute.xlu0 0
          %1350 = vperm.xlu0 %1349, %v493
          %v1351 = vpop.permute.xlu0 %1350
          %1354 = vset.pattern.permute.xlu0 0
          %1355 = vperm.xlu0 %1354, %v494
          %v1356 = vpop.permute.xlu0 %1355
          %1359 = vset.pattern.permute.xlu0 0
          %1360 = vperm.xlu0 %1359, %v495
          %v1361 = vpop.permute.xlu0 %1360
          %1364 = vset.pattern.permute.xlu0 0
          %1365 = vperm.xlu0 %1364, %v496
          %v1366 = vpop.permute.xlu0 %1365
          %1369 = vset.pattern.permute.xlu0 0
          %1370 = vperm.xlu0 %1369, %v497
          %v1371 = vpop.permute.xlu0 %1370
          %1374 = vset.pattern.permute.xlu0 0
          %1375 = vperm.xlu0 %1374, %v498
          %v1376 = vpop.permute.xlu0 %1375
          %1379 = vset.pattern.permute.xlu0 0
          %1380 = vperm.xlu0 %1379, %v499
          %v1381 = vpop.permute.xlu0 %1380
          %1384 = vset.pattern.permute.xlu0 0
          %1385 = vperm.xlu0 %1384, %v500
          %v1386 = vpop.permute.xlu0 %1385
          %1389 = vset.pattern.permute.xlu0 0
          %1390 = vperm.xlu0 %1389, %v501
          %v1391 = vpop.permute.xlu0 %1390
          %1394 = vset.pattern.permute.xlu0 0
          %1395 = vperm.xlu0 %1394, %v502
          %v1396 = vpop.permute.xlu0 %1395
          %1399 = vset.pattern.permute.xlu0 0
          %1400 = vperm.xlu0 %1399, %v503
          %v1401 = vpop.permute.xlu0 %1400
          %1404 = vset.pattern.permute.xlu0 0
          %1405 = vperm.xlu0 %1404, %v504
          %v1406 = vpop.permute.xlu0 %1405
          %v1408 = vmul.f32 %v1331, %v1250
          %v1409 = vmul.f32 %v1336, %v1253
          %v1410 = vmul.f32 %v1341, %v1258
          %v1411 = vmul.f32 %v1346, %v1261
          %v1412 = vmul.f32 %v1351, %v1266
          %v1413 = vmul.f32 %v1356, %v1269
          %v1414 = vmul.f32 %v1361, %v1274
          %v1415 = vmul.f32 %v1366, %v1277
          %v1416 = vmul.f32 %v1371, %v1282
          %v1417 = vmul.f32 %v1376, %v1285
          %v1418 = vmul.f32 %v1381, %v1290
          %v1419 = vmul.f32 %v1386, %v1293
          %v1420 = vmul.f32 %v1391, %v1298
          %v1421 = vmul.f32 %v1396, %v1301
          %v1422 = vmul.f32 %v1401, %v1306
          %v1423 = vmul.f32 %v1406, %v1309
          %v1424 = vadd.f32 %v1312, %v1408
          %v1425 = vadd.f32 %v1313, %v1409
          %v1426 = vadd.f32 %v1314, %v1410
          %v1427 = vadd.f32 %v1315, %v1411
          %v1428 = vadd.f32 %v1316, %v1412
          %v1429 = vadd.f32 %v1317, %v1413
          %v1430 = vadd.f32 %v1318, %v1414
          %v1431 = vadd.f32 %v1319, %v1415
          %v1432 = vadd.f32 %v1320, %v1416
          %v1433 = vadd.f32 %v1321, %v1417
          %v1434 = vadd.f32 %v1322, %v1418
          %v1435 = vadd.f32 %v1323, %v1419
          %v1436 = vadd.f32 %v1324, %v1420
          %v1437 = vadd.f32 %v1325, %v1421
          %v1438 = vadd.f32 %v1326, %v1422
          %v1439 = vadd.f32 %v1327, %v1423
          %1440 = vst [vmem:[#allocation2] sm:$0xff] %v1424
          %1441 = vst [vmem:[#allocation2 + $0x8] sm:$0xff] %v1425
          %1442 = vst [vmem:[#allocation2 + $0x10] sm:$0xff] %v1426
          %1443 = vst [vmem:[#allocation2 + $0x18] sm:$0xff] %v1427
          %1444 = vst [vmem:[#allocation2 + $0x20] sm:$0xff] %v1428
          %1445 = vst [vmem:[#allocation2 + $0x28] sm:$0xff] %v1429
          %1446 = vst [vmem:[#allocation2 + $0x30] sm:$0xff] %v1430
          %1447 = vst [vmem:[#allocation2 + $0x38] sm:$0xff] %v1431
          %1448 = vst [vmem:[#allocation2 + $0x40] sm:$0xff] %v1432
          %1449 = vst [vmem:[#allocation2 + $0x48] sm:$0xff] %v1433
          %1450 = vst [vmem:[#allocation2 + $0x50] sm:$0xff] %v1434
          %1451 = vst [vmem:[#allocation2 + $0x58] sm:$0xff] %v1435
          %1452 = vst [vmem:[#allocation2 + $0x60] sm:$0xff] %v1436
          %1453 = vst [vmem:[#allocation2 + $0x68] sm:$0xff] %v1437
          %1454 = vst [vmem:[#allocation2 + $0x70] sm:$0xff] %v1438
          %1455 = vst [vmem:[#allocation2 + $0x78] sm:$0xff] %v1439
          // Predicated region
          $region61: #{tpu_custom_call.1} parent=59 // pred_check
            %p1456 = pneg %p440
          $region62: #{tpu_custom_call.1} parent=59 // pred_check_branch
            %1458 = sbr.rel (%p1456) target = $region64
          $region63: #{tpu_custom_call.1} parent=59 // pred_region
            %v1459 = vld [vmem:[#allocation2] sm:$0xff]
            %v1460 = vld [vmem:[#allocation2 + $0x8] sm:$0xff]
            %v1461 = vld [vmem:[#allocation2 + $0x10] sm:$0xff]
            %v1462 = vld [vmem:[#allocation2 + $0x18] sm:$0xff]
            %v1463 = vld [vmem:[#allocation2 + $0x20] sm:$0xff]
            %v1464 = vld [vmem:[#allocation2 + $0x28] sm:$0xff]
            %v1465 = vld [vmem:[#allocation2 + $0x30] sm:$0xff]
            %v1466 = vld [vmem:[#allocation2 + $0x38] sm:$0xff]
            %v1467 = vld [vmem:[#allocation2 + $0x40] sm:$0xff]
            %v1468 = vld [vmem:[#allocation2 + $0x48] sm:$0xff]
            %v1469 = vld [vmem:[#allocation2 + $0x50] sm:$0xff]
            %v1470 = vld [vmem:[#allocation2 + $0x58] sm:$0xff]
            %v1471 = vld [vmem:[#allocation2 + $0x60] sm:$0xff]
            %v1472 = vld [vmem:[#allocation2 + $0x68] sm:$0xff]
            %v1473 = vld [vmem:[#allocation2 + $0x70] sm:$0xff]
            %v1474 = vld [vmem:[#allocation2 + $0x78] sm:$0xff]
            %v1475 = vld [vmem:[%s436] sm:$0x1]
            %v1476 = vunpack.c.l.bf16 %v1475
            %v1477 = vlaneseq
            %v1478 = vshrl.u32 %v1477, 7
            %v1479 = vsub.s32 0, %v1478
            %v1480 = vrot.slane %v1476, %v1479
            %v1481 = vmul.f32 %v1331, %v1480
            %v1482 = vmul.f32 %v1336, %v1480
            %v1483 = vmul.f32 %v1341, %v1480
            %v1484 = vmul.f32 %v1346, %v1480
            %v1485 = vmul.f32 %v1351, %v1480
            %v1486 = vmul.f32 %v1356, %v1480
            %v1487 = vmul.f32 %v1361, %v1480
            %v1488 = vmul.f32 %v1366, %v1480
            %v1489 = vmul.f32 %v1371, %v1480
            %v1490 = vmul.f32 %v1376, %v1480
            %v1491 = vmul.f32 %v1381, %v1480
            %v1492 = vmul.f32 %v1386, %v1480
            %v1493 = vmul.f32 %v1391, %v1480
            %v1494 = vmul.f32 %v1396, %v1480
            %v1495 = vmul.f32 %v1401, %v1480
            %v1496 = vmul.f32 %v1406, %v1480
            %v1497 = vadd.f32 %v1459, %v1481
            %v1498 = vadd.f32 %v1460, %v1482
            %v1499 = vadd.f32 %v1461, %v1483
            %v1500 = vadd.f32 %v1462, %v1484
            %v1501 = vadd.f32 %v1463, %v1485
            %v1502 = vadd.f32 %v1464, %v1486
            %v1503 = vadd.f32 %v1465, %v1487
            %v1504 = vadd.f32 %v1466, %v1488
            %v1505 = vadd.f32 %v1467, %v1489
            %v1506 = vadd.f32 %v1468, %v1490
            %v1507 = vadd.f32 %v1469, %v1491
            %v1508 = vadd.f32 %v1470, %v1492
            %v1509 = vadd.f32 %v1471, %v1493
            %v1510 = vadd.f32 %v1472, %v1494
            %v1511 = vadd.f32 %v1473, %v1495
            %v1512 = vadd.f32 %v1474, %v1496
            %1513 = vst [vmem:[#allocation2] sm:$0xff] %v1497
            %1514 = vst [vmem:[#allocation2 + $0x8] sm:$0xff] %v1498
            %1515 = vst [vmem:[#allocation2 + $0x10] sm:$0xff] %v1499
            %1516 = vst [vmem:[#allocation2 + $0x18] sm:$0xff] %v1500
            %1517 = vst [vmem:[#allocation2 + $0x20] sm:$0xff] %v1501
            %1518 = vst [vmem:[#allocation2 + $0x28] sm:$0xff] %v1502
            %1519 = vst [vmem:[#allocation2 + $0x30] sm:$0xff] %v1503
            %1520 = vst [vmem:[#allocation2 + $0x38] sm:$0xff] %v1504
            %1521 = vst [vmem:[#allocation2 + $0x40] sm:$0xff] %v1505
            %1522 = vst [vmem:[#allocation2 + $0x48] sm:$0xff] %v1506
            %1523 = vst [vmem:[#allocation2 + $0x50] sm:$0xff] %v1507
            %1524 = vst [vmem:[#allocation2 + $0x58] sm:$0xff] %v1508
            %1525 = vst [vmem:[#allocation2 + $0x60] sm:$0xff] %v1509
            %1526 = vst [vmem:[#allocation2 + $0x68] sm:$0xff] %v1510
            %1527 = vst [vmem:[#allocation2 + $0x70] sm:$0xff] %v1511
            %1528 = vst [vmem:[#allocation2 + $0x78] sm:$0xff] %v1512
          $region64: #{tpu_custom_call.1} parent=59 // pred_fallthru
            _
        $region60: #{tpu_custom_call.1} parent=43 // pred_fallthru
          _
        %p1529 = scmp.eq.s32.totalorder %s35, 4
        %p1530 = pnand %p1529, %p440
        %p1531 = pneg %p1530
        // Predicated region
        $region65: #{tpu_custom_call.1} parent=43 // pred_check
          _
        $region66: #{tpu_custom_call.1} parent=43 // pred_check_branch
          %1533 = sbr.rel (%p1530) target = $region68
        $region67: #{tpu_custom_call.1} parent=43 // pred_region
          %v1534 = vld [vmem:[#allocation2] sm:$0xff]
          %v1535 = vld [vmem:[#allocation2 + $0x8] sm:$0xff]
          %v1536 = vld [vmem:[#allocation2 + $0x10] sm:$0xff]
          %v1537 = vld [vmem:[#allocation2 + $0x18] sm:$0xff]
          %v1538 = vld [vmem:[#allocation2 + $0x20] sm:$0xff]
          %v1539 = vld [vmem:[#allocation2 + $0x28] sm:$0xff]
          %v1540 = vld [vmem:[#allocation2 + $0x30] sm:$0xff]
          %v1541 = vld [vmem:[#allocation2 + $0x38] sm:$0xff]
          %v1542 = vld [vmem:[#allocation2 + $0x40] sm:$0xff]
          %v1543 = vld [vmem:[#allocation2 + $0x48] sm:$0xff]
          %v1544 = vld [vmem:[#allocation2 + $0x50] sm:$0xff]
          %v1545 = vld [vmem:[#allocation2 + $0x58] sm:$0xff]
          %v1546 = vld [vmem:[#allocation2 + $0x60] sm:$0xff]
          %v1547 = vld [vmem:[#allocation2 + $0x68] sm:$0xff]
          %v1548 = vld [vmem:[#allocation2 + $0x70] sm:$0xff]
          %v1549 = vld [vmem:[#allocation2 + $0x78] sm:$0xff]
          %v1550 = vpack.c.bf16 %v1535, %v1534
          %v1551 = vpack.c.bf16 %v1537, %v1536
          %v1552 = vpack.c.bf16 %v1539, %v1538
          %v1553 = vpack.c.bf16 %v1541, %v1540
          %v1554 = vpack.c.bf16 %v1543, %v1542
          %v1555 = vpack.c.bf16 %v1545, %v1544
          %v1556 = vpack.c.bf16 %v1547, %v1546
          %v1557 = vpack.c.bf16 %v1549, %v1548
          %v1566 = vunpack.c.l.b16 %v1550
          %v1567 = vunpack.c.h.b16 %v1550
          %v1568 = vunpack.c.l.b16 %v1551
          %v1569 = vunpack.c.h.b16 %v1551
          %v1570 = vunpack.c.l.b16 %v1552
          %v1571 = vunpack.c.h.b16 %v1552
          %v1572 = vunpack.c.l.b16 %v1553
          %v1573 = vunpack.c.h.b16 %v1553
          %v1574 = vunpack.c.l.b16 %v1554
          %v1575 = vunpack.c.h.b16 %v1554
          %v1576 = vunpack.c.l.b16 %v1555
          %v1577 = vunpack.c.h.b16 %v1555
          %v1578 = vunpack.c.l.b16 %v1556
          %v1579 = vunpack.c.h.b16 %v1556
          %v1580 = vunpack.c.l.b16 %v1557
          %v1581 = vunpack.c.h.b16 %v1557
          %v1582 = vpack.c.b16 %v1566, %v1566
          %v1583 = vpack.c.b16 %v1567, %v1567
          %v1584 = vpack.c.b16 %v1568, %v1568
          %v1585 = vpack.c.b16 %v1569, %v1569
          %v1586 = vpack.c.b16 %v1570, %v1570
          %v1587 = vpack.c.b16 %v1571, %v1571
          %v1588 = vpack.c.b16 %v1572, %v1572
          %v1589 = vpack.c.b16 %v1573, %v1573
          %v1590 = vpack.c.b16 %v1574, %v1574
          %v1591 = vpack.c.b16 %v1575, %v1575
          %v1592 = vpack.c.b16 %v1576, %v1576
          %v1593 = vpack.c.b16 %v1577, %v1577
          %v1594 = vpack.c.b16 %v1578, %v1578
          %v1595 = vpack.c.b16 %v1579, %v1579
          %v1596 = vpack.c.b16 %v1580, %v1580
          %v1597 = vpack.c.b16 %v1581, %v1581
          %1614 = vst [vmem:[#allocation10] sm:$0xf] %v1582
          %1615 = vst [vmem:[#allocation10 + $0x4] sm:$0xf] %v1583
          %1616 = vst [vmem:[#allocation10 + $0x8] sm:$0xf] %v1584
          %1617 = vst [vmem:[#allocation10 + $0xc] sm:$0xf] %v1585
          %1618 = vst [vmem:[#allocation10 + $0x10] sm:$0xf] %v1586
          %1619 = vst [vmem:[#allocation10 + $0x14] sm:$0xf] %v1587
          %1620 = vst [vmem:[#allocation10 + $0x18] sm:$0xf] %v1588
          %1621 = vst [vmem:[#allocation10 + $0x1c] sm:$0xf] %v1589
          %1622 = vst [vmem:[#allocation10 + $0x20] sm:$0xf] %v1590
          %1623 = vst [vmem:[#allocation10 + $0x24] sm:$0xf] %v1591
          %1624 = vst [vmem:[#allocation10 + $0x28] sm:$0xf] %v1592
          %1625 = vst [vmem:[#allocation10 + $0x2c] sm:$0xf] %v1593
          %1626 = vst [vmem:[#allocation10 + $0x30] sm:$0xf] %v1594
          %1627 = vst [vmem:[#allocation10 + $0x34] sm:$0xf] %v1595
          %1628 = vst [vmem:[#allocation10 + $0x38] sm:$0xf] %v1596
          %1629 = vst [vmem:[#allocation10 + $0x3c] sm:$0xf] %v1597
        $region68: #{tpu_custom_call.1} parent=43 // pred_fallthru
          _
        // Predicated region
        $region69: #{tpu_custom_call.1} parent=43 // pred_check
          %p1630 = pneg %p230
        $region70: #{tpu_custom_call.1} parent=43 // pred_check_branch
          %1632 = sbr.rel (%p1630) target = $region72
        $region71: #{tpu_custom_call.1} parent=43 // pred_region
          %s1633 = smul.u32 16, %s34
          %s1635 = ssub.s32 1024, 1024
          %1636 = vsyncadd [#allocation7], %s1635
          %s1637 = smul.addr %s1633, 64
          %s1638 = scalar_lea.hbm %s7, %s1637
          %s1639 = sshll.u32 [#allocation10], 4
          %s1640 = int_to_ptr.vmem [resolvable:$true] %s1639
          %1645 = dma.vmem_to_hbm [thread:$0]  %s1640, 1024, %s1638, [#allocation7], 64, 64, 4
        $region72: #{tpu_custom_call.1} parent=43 // pred_fallthru
          _
        // Predicated region
        $region73: #{tpu_custom_call.1} parent=43 // pred_check
          %p1646 = pneg %p230
        $region74: #{tpu_custom_call.1} parent=43 // pred_check_branch
          %1648 = sbr.rel (%p1646) target = $region76
        $region75: #{tpu_custom_call.1} parent=43 // pred_region
          %1649 = dma.done [#allocation7], 1024
        $region76: #{tpu_custom_call.1} parent=43 // pred_fallthru
          _
      $region44: #{tpu_custom_call.1} parent=5 // pred_fallthru
        _
      %p1650 = scmp.le.s32.totalorder 2, %s24
      // Predicated region
      $region77: #{tpu_custom_call.1} parent=5 // pred_check
        %p1651 = pneg %p1650
      $region78: #{tpu_custom_call.1} parent=5 // pred_check_branch
        %1653 = sbr.rel (%p1651) target = $region80
      $region79: #{tpu_custom_call.1} parent=5 // pred_region
        %s1654 = ssub.s32 %s24, 2
      $region80: #{tpu_custom_call.1} parent=5 // pred_fallthru
        _
    $region6: #{tpu_custom_call.1} parent=1 // loop_footer
      %s28 = sadd.s32 1, %s24
    $region7: #{tpu_custom_call.1} parent=1 // loop_footer_branch
      %23 = sbr.rel target = $region3
    $region8: #{tpu_custom_call.1} parent=1 // loop_exit
      _
    %1655 = vsyncpa [#allocation6], 1
    %s1656 = scalar_lea.sflag [#allocation6], 1
    %1657 = vsyncpa %s1656, 1
    %1658 = vsyncpa [#allocation9], 1
    %s1659 = scalar_lea.sflag [#allocation9], 1
    %1660 = vsyncpa %s1659, 1
    %1661 = vsyncpa [#allocation7], 1
    %s1662 = scalar_lea.sflag [#allocation7], 1
    %1663 = vsyncpa %s1662, 1

</llo_original>
